<compile_context>
chip_gen: v7x
topology: tpu7x:2x2x1
jax: 0.10.0
libtpu: 0.0.40
codegen_flags: <defaults>
</compile_context>

<pallas_src>
import jax
import jax.numpy as jnp
from jax.experimental import pallas as pl

# ----------------------------- configuration -------------------------------
N_ENTITY = 20
N_RELATION = 5
DIM = 32
N_HOP = 2
BATCH = 2
N_TRIPLE = 8          # keep a multiple of 8 so the fat-M tiles stay sublane aligned

OUT_ROWS = 8          # output slab rows (scores rows 0..B-1, loss row B)
OUT_LANES = 128       # lane-dense output (single unmasked full-tile store)


# ----------------------------- fused Pallas kernel --------------------------
def _make_ckan_kernel(n_hop, batch, n_triple, dim, er_rows):
    """Build the fused CKAN kernel for static (n_hop, batch, n_triple, dim)."""
    B, T, D = batch, n_triple, dim
    HB = n_hop * B                    # hop-instances per set (user or item)
    G = 2 * HB                        # (set, hop, batch) groups
    M = G * T                         # fat-M rows
    ER = er_rows                      # entity rows + relation rows in packed table

    def kernel(idx_ref, items_ref, y_ref, emb_ref, w1_ref, w2_ref, w3_ref, out_ref):
        f32 = jnp.float32

        # Fat-M row-order contract (must match the wrapper's flatten order):
        #   [user hop0 (b0 t0..tT-1, b1 ...), user hop1, ..., item hop0, item hop1, ...]
        # so row m belongs to group g = m // T, with g = hop*B + b for user rows
        # and g = HB + hop*B + b for item rows.

        # ---- indices -> one-hot rows (the gather itself happens on the MXU) --
        idx = idx_ref[...]                                        # (M, 3) int32
        lane = jax.lax.broadcasted_iota(jnp.int32, (M, ER), 1)
        oh_h = (lane == idx[:, 0:1]).astype(f32)                  # entity rows
        oh_r = (lane == idx[:, 1:2]).astype(f32)                  # relation rows (pre-shifted +E)
        oh_t = (lane == idx[:, 2:3]).astype(f32)
        oh_hr = oh_h + oh_r                                       # disjoint ranges -> "two-hot"

        emb = emb_ref[...]                                        # (ER, 2D) block-diag [ent|0 ; 0|rel]

        # one matmul does BOTH gathers and yields the lane-packed [h | r]:
        hr = jnp.dot(oh_hr, emb, preferred_element_type=f32)      # (M, 2D)
        h = hr[:, :D]                                             # (M, D)
        t = jnp.dot(oh_t, emb, preferred_element_type=f32)[:, :D]   # (M, D)

        lane8 = jax.lax.broadcasted_iota(jnp.int32, (OUT_ROWS, ER), 1)
        oh_v = (lane8 == items_ref[...]).astype(f32)              # (8, ER)
        v0 = jnp.dot(oh_v, emb, preferred_element_type=f32)[:, :D]  # (8, D); rows >= B padding

        # ---- attention MLP: one fat-M matmul per layer -----------------------
        x = jnp.maximum(jnp.dot(hr, w1_ref[...], preferred_element_type=f32), 0.0)
        x = jnp.maximum(jnp.dot(x, w2_ref[...], preferred_element_type=f32), 0.0)
        z = jnp.sum(x * w3_ref[...], axis=-1, keepdims=True)      # (M, 1): last layer, out-dim 1
        att = pl.reciprocal(1.0 + jnp.exp(-z), approx=True)       # sigmoid (EUP reciprocal)

        # ---- grouped softmax + aggregation via 0/1 block-sum matmuls ---------
        # att = sigmoid(z) is in (0,1), so exp() without max-subtraction is
        # numerically safe and mathematically identical to softmax.  Keep this
        # invariant if the sigmoid is ever changed.
        e = jnp.exp(att)                                          # (M, 1)
        colM = jax.lax.broadcasted_iota(jnp.int32, (G, M), 1)
        rowG = jax.lax.broadcasted_iota(jnp.int32, (G, M), 0)
        dG = colM - rowG * T
        S = ((dG >= 0) & (dG < T)).astype(f32)                    # (G, M) block-sum matrix
        num = jnp.dot(S, e * t, preferred_element_type=f32)       # (G, D): sum_t e*t per group
        den = jnp.dot(S, jnp.broadcast_to(e, (M, D)),
                      preferred_element_type=f32)                 # (G, D): sum_t e (replicated)
        agg = num * pl.reciprocal(den, approx=True)               # (G, D) softmax-weighted sum

        # ---- u0 (mean of user-hop0 heads) --------------------------------------
        colM0 = jax.lax.broadcasted_iota(jnp.int32, (OUT_ROWS, M), 1)
        row0 = jax.lax.broadcasted_iota(jnp.int32, (OUT_ROWS, M), 0)
        d0 = colM0 - row0 * T
        S0 = ((d0 >= 0) & (d0 < T)).astype(f32)                   # (8, M): rows <B pick user hop0
        u0 = jnp.dot(S0, h, preferred_element_type=f32) * (1.0 / T)  # (8, D); rows >= B unused

        # ---- predict: hop-aligned concat-dot == sum of per-hop dots ------------
        P = agg[:HB] * agg[HB:]                                   # (HB, D) user_hop * item_hop
        colH = jax.lax.broadcasted_iota(jnp.int32, (OUT_ROWS, HB), 1)
        rowH = jax.lax.broadcasted_iota(jnp.int32, (OUT_ROWS, HB), 0)
        A = jnp.zeros((OUT_ROWS, HB), f32)
        for k in range(n_hop):                                    # static: builds one 0/1 matrix
            A = A + (colH == rowH + k * B).astype(f32)
        contrib = jnp.dot(A, P, preferred_element_type=f32)       # (8, D): sum over hops per batch
        s = jnp.sum(u0 * v0 + contrib, axis=-1, keepdims=True)    # (8, 1) logits; rows >= B padding
        p = pl.reciprocal(1.0 + jnp.exp(-s), approx=True)         # sigmoid scores

        # ---- BCE from the logit (stable softplus), clamped like torch.BCELoss --
        def softplus(v):
            return jnp.maximum(v, 0.0) + jnp.log(1.0 + jnp.exp(-jnp.abs(v)))

        logp = jnp.maximum(-softplus(-s), -100.0)                 # log(sigmoid(s))
        log1mp = jnp.maximum(-softplus(s), -100.0)                # log(1 - sigmoid(s))
        y = y_ref[...]                                            # (8, 1) zero-padded labels
        valid = (jax.lax.broadcasted_iota(jnp.int32, (OUT_ROWS, 1), 0) < B).astype(f32)
        bce = -(y * logp + (1.0 - y) * log1mp) * valid
        loss = jnp.sum(bce, axis=0, keepdims=True) * (1.0 / B)    # (1, 1) mean over batch

        # ---- single lane-dense output slab --------------------------------------
        rowO = jax.lax.broadcasted_iota(jnp.int32, (OUT_ROWS, OUT_LANES), 0)
        out_ref[...] = jnp.where(rowO < B,
                                 jnp.broadcast_to(p, (OUT_ROWS, OUT_LANES)),
                                 jnp.broadcast_to(loss, (OUT_ROWS, OUT_LANES)))

    return kernel


# ----------------------------- parameter packing ----------------------------
def pack_params(params):
    """Pack parameters into the layouts the fused kernel consumes (done once)."""
    ent = params["entity_emb"].astype(jnp.float32)     # (E, D)
    rel = params["relation_emb"].astype(jnp.float32)   # (R, D)
    E, D = ent.shape
    R = rel.shape[0]
    # Block-diagonal [ent | 0 ; 0 | rel]: a "two-hot" row selects h into lanes
    # 0..D-1 and r into lanes D..2D-1 with a single MXU matmul.
    emb_bd = jnp.zeros((E + R, 2 * D), jnp.float32)
    emb_bd = emb_bd.at[:E, :D].set(ent).at[E:, D:].set(rel)
    w1s = jnp.concatenate([params["w1h"], params["w1r"]], axis=0)   # (2D, D)
    return dict(emb_bd=emb_bd, w1s=w1s, w2=params["w2"], w3=params["w3"])


# ----------------------------- full forward --------------------------------
def ckan_forward(packed, items, labels, user_triple_set, item_triple_set,
                 *, n_ent_rows=N_ENTITY + 1):
    """Whole CKAN forward: int32 index prep + ONE fused Pallas kernel."""
    emb_bd, w1s, w2, w3 = packed["emb_bd"], packed["w1s"], packed["w2"], packed["w3"]
    _, n_hop, B, T = user_triple_set.shape               # (3, n_hop, B, T)
    ER, two_d = emb_bd.shape
    D = two_d // 2
    assert B + 1 <= OUT_ROWS, "output slab holds B score rows plus one loss row"

    # Fat-M row order contract (matches the kernel's group math):
    #   [user hop0, user hop1, ..., item hop0, item hop1, ...], each (batch, triple).
    h_idx = jnp.concatenate([user_triple_set[0].reshape(-1),
                             item_triple_set[0].reshape(-1)])
    r_idx = jnp.concatenate([user_triple_set[1].reshape(-1),
                             item_triple_set[1].reshape(-1)]) + n_ent_rows  # shift into rel rows
    t_idx = jnp.concatenate([user_triple_set[2].reshape(-1),
                             item_triple_set[2].reshape(-1)])
    idx_hrt = jnp.stack([h_idx, r_idx, t_idx], axis=-1).astype(jnp.int32)   # (M, 3)

    items8 = jnp.zeros((OUT_ROWS, 1), jnp.int32).at[:B, 0].set(items.astype(jnp.int32))
    y8 = jnp.zeros((OUT_ROWS, 1), jnp.float32).at[:B, 0].set(labels.astype(jnp.float32))

    kernel = _make_ckan_kernel(n_hop=n_hop, batch=B, n_triple=T, dim=D, er_rows=ER)
    out = pl.pallas_call(
        kernel,
        out_shape=jax.ShapeDtypeStruct((OUT_ROWS, OUT_LANES), jnp.float32),
    )(idx_hrt, items8, y8, emb_bd, w1s, w2, w3)

    scores = out[:B, 0]
    loss = out[B, 0]
    return dict(scores=scores, base_loss=loss, loss=loss), []


# ----------------------------- pure-JAX reference ---------------------------
def _ref_attention(h, r, t, w1h, w1r, w2, w3):
    x = jnp.maximum(h @ w1h + r @ w1r, 0.0)
    x = jnp.maximum(x @ w2, 0.0)
    z = jnp.sum(x * w3[None, :, :], axis=-1)
    att = jax.nn.sigmoid(z)
    att = jax.nn.softmax(att, axis=-1)
    return jnp.sum(att[..., None] * t, axis=1)


def ckan_forward_ref(params, items, labels, user_ts, item_ts, n_hop=N_HOP):
    ent, rel = params["entity_emb"], params["relation_emb"]
    w1h, w1r, w2, w3 = params["w1h"], params["w1r"], params["w2"], params["w3"]

    def hop(ts, i):
        return _ref_attention(jnp.take(ent, ts[0, i], axis=0),
                              jnp.take(rel, ts[1, i], axis=0),
                              jnp.take(ent, ts[2, i], axis=0),
                              w1h, w1r, w2, w3)

    u = [jnp.take(ent, user_ts[0, 0], axis=0).mean(axis=1)]
    u += [hop(user_ts, i) for i in range(n_hop)]
    v = [jnp.take(ent, items, axis=0)]
    v += [hop(item_ts, i) for i in range(n_hop)]
    e_u, e_v = u[0], v[0]
    for i in range(1, len(u)):
        e_u = jnp.concatenate((u[i], e_u), axis=-1)
    for i in range(1, len(v)):
        e_v = jnp.concatenate((v[i], e_v), axis=-1)
    scores = jax.nn.sigmoid(jnp.sum(e_u * e_v, axis=1))
    y = labels.astype(jnp.float32)
    logp = jnp.maximum(jnp.log(scores), -100.0)
    log1mp = jnp.maximum(jnp.log(1.0 - scores), -100.0)
    loss = jnp.mean(-(y * logp + (1.0 - y) * log1mp))
    return scores, loss


# ----------------------------- parameter init -------------------------------
def xavier_uniform(key, shape):
    fan_out, fan_in = shape[0], shape[1]
    bound = (6.0 / (fan_in + fan_out)) ** 0.5
    return jax.random.uniform(key, shape, jnp.float32, -bound, bound)


def init_params(key, n_entity, n_relation, dim):
    k = jax.random.split(key, 5)
    entity_emb = xavier_uniform(k[0], (n_entity + 1, dim))
    relation_emb = xavier_uniform(k[1], (n_relation + 1, dim))
    w1 = xavier_uniform(k[2], (dim, 2 * dim))   # torch Linear(2*dim, dim).weight
    w2 = xavier_uniform(k[3], (dim, dim))       # Linear(dim, dim).weight
    w3 = xavier_uniform(k[4], (1, dim))         # Linear(dim, 1).weight
    return dict(
        entity_emb=entity_emb,
        relation_emb=relation_emb,
        w1h=w1[:, :dim].T,    # (dim, dim): acts on h
        w1r=w1[:, dim:].T,    # (dim, dim): acts on r
        w2=w2.T,              # (dim, dim)
        w3=w3,                # (1, dim)
    )


# --------------------------------- main -------------------------------------
if __name__ == "__main__":
    root = jax.random.PRNGKey(0)
    kp, ki, kl, ku, kv = jax.random.split(root, 5)

    params = init_params(kp, N_ENTITY, N_RELATION, DIM)
    packed = pack_params(params)

    items = jax.random.randint(ki, (BATCH,), 0, N_ENTITY + 1, dtype=jnp.int32)
    labels = jax.random.bernoulli(kl, 0.5, (BATCH,)).astype(jnp.float32)

    ku_h, ku_r, ku_t = jax.random.split(ku, 3)
    user_triple_set = jnp.stack([
        jax.random.randint(ku_h, (N_HOP, BATCH, N_TRIPLE), 0, N_ENTITY + 1, dtype=jnp.int32),
        jax.random.randint(ku_r, (N_HOP, BATCH, N_TRIPLE), 0, N_RELATION + 1, dtype=jnp.int32),
        jax.random.randint(ku_t, (N_HOP, BATCH, N_TRIPLE), 0, N_ENTITY + 1, dtype=jnp.int32),
    ], axis=0)  # (3, n_hop, batch, n_triple)

    kv_h, kv_r, kv_t = jax.random.split(kv, 3)
    item_triple_set = jnp.stack([
        jax.random.randint(kv_h, (N_HOP, BATCH, N_TRIPLE), 0, N_ENTITY + 1, dtype=jnp.int32),
        jax.random.randint(kv_r, (N_HOP, BATCH, N_TRIPLE), 0, N_RELATION + 1, dtype=jnp.int32),
        jax.random.randint(kv_t, (N_HOP, BATCH, N_TRIPLE), 0, N_ENTITY + 1, dtype=jnp.int32),
    ], axis=0)

    fwd = jax.jit(ckan_forward)
    out_dict, _ = fwd(packed, items, labels, user_triple_set, item_triple_set)
    scores = jax.block_until_ready(out_dict["scores"])
    loss = jax.block_until_ready(out_dict["loss"])

    ref_scores, ref_loss = ckan_forward_ref(params, items, labels,
                                            user_triple_set, item_triple_set)
    # Tolerance is looser than f32 ulp because the kernel uses the EUP's
    # approximate reciprocal (pl.reciprocal(approx=True)) for sigmoid/softmax.
    assert jnp.allclose(scores, ref_scores, rtol=2e-3, atol=2e-3), (scores, ref_scores)
    assert jnp.allclose(loss, ref_loss, rtol=2e-3, atol=2e-3), (loss, ref_loss)

    print("KERNEL_OK")
</pallas_src>

<mosaic_0001>
module attributes {stable_mosaic.version = 11 : i64} {
  func.func @kernel(%arg0: memref<64x3xi32, #tpu.memory_space<vmem>>, %arg1: memref<8x1xi32, #tpu.memory_space<vmem>>, %arg2: memref<8x1xf32, #tpu.memory_space<vmem>>, %arg3: memref<27x64xf32, #tpu.memory_space<vmem>>, %arg4: memref<64x32xf32, #tpu.memory_space<vmem>>, %arg5: memref<32x32xf32, #tpu.memory_space<vmem>>, %arg6: memref<1x32xf32, #tpu.memory_space<vmem>>, %arg7: memref<8x128xf32, #tpu.memory_space<vmem>>) attributes {dimension_semantics = [], scalar_prefetch = 0 : i64, scratch_operands = 0 : i64, tpu.core_type = #tpu.core_type<tc>} {
    %c0 = arith.constant 0 : index
    %c0_0 = arith.constant 0 : index
    %0 = vector.load %arg0[%c0, %c0_0] : memref<64x3xi32, #tpu.memory_space<vmem>>, vector<64x3xi32>
    %1 = tpu.iota {dimensions = array<i32: 1>} : vector<64x27xi32>
    %2 = vector.extract_strided_slice %0 {offsets = [0, 0], sizes = [64, 1], strides = [1, 1]} : vector<64x3xi32> to vector<64x1xi32>
    %3 = vector.broadcast %2 : vector<64x1xi32> to vector<64x27xi32>
    %4 = arith.cmpi eq, %1, %3 : vector<64x27xi32>
    %5 = arith.extui %4 : vector<64x27xi1> to vector<64x27xi32>
    %6 = arith.sitofp %5 : vector<64x27xi32> to vector<64x27xf32>
    %7 = vector.extract_strided_slice %0 {offsets = [0, 1], sizes = [64, 1], strides = [1, 1]} : vector<64x3xi32> to vector<64x1xi32>
    %8 = vector.broadcast %7 : vector<64x1xi32> to vector<64x27xi32>
    %9 = arith.cmpi eq, %1, %8 : vector<64x27xi32>
    %10 = arith.extui %9 : vector<64x27xi1> to vector<64x27xi32>
    %11 = arith.sitofp %10 : vector<64x27xi32> to vector<64x27xf32>
    %12 = vector.extract_strided_slice %0 {offsets = [0, 2], sizes = [64, 1], strides = [1, 1]} : vector<64x3xi32> to vector<64x1xi32>
    %13 = vector.broadcast %12 : vector<64x1xi32> to vector<64x27xi32>
    %14 = arith.cmpi eq, %1, %13 : vector<64x27xi32>
    %15 = arith.extui %14 : vector<64x27xi1> to vector<64x27xi32>
    %16 = arith.sitofp %15 : vector<64x27xi32> to vector<64x27xf32>
    %17 = arith.addf %6, %11 : vector<64x27xf32>
    %c0_1 = arith.constant 0 : index
    %c0_2 = arith.constant 0 : index
    %18 = vector.load %arg3[%c0_1, %c0_2] : memref<27x64xf32, #tpu.memory_space<vmem>>, vector<27x64xf32>
    %cst = arith.constant dense<0.000000e+00> : vector<64x64xf32>
    %19 = tpu.matmul %17, %18, %cst {dimension_numbers = #tpu.dot_dimension_numbers<[1], [0], [0], [1], [0, 0, 1, 1], [], []>} : vector<64x27xf32>, vector<27x64xf32>, vector<64x64xf32> -> vector<64x64xf32>
    %20 = vector.extract_strided_slice %19 {offsets = [0, 0], sizes = [64, 32], strides = [1, 1]} : vector<64x64xf32> to vector<64x32xf32>
    %cst_3 = arith.constant dense<0.000000e+00> : vector<64x64xf32>
    %21 = tpu.matmul %16, %18, %cst_3 {dimension_numbers = #tpu.dot_dimension_numbers<[1], [0], [0], [1], [0, 0, 1, 1], [], []>} : vector<64x27xf32>, vector<27x64xf32>, vector<64x64xf32> -> vector<64x64xf32>
    %22 = vector.extract_strided_slice %21 {offsets = [0, 0], sizes = [64, 32], strides = [1, 1]} : vector<64x64xf32> to vector<64x32xf32>
    %23 = tpu.iota {dimensions = array<i32: 1>} : vector<8x27xi32>
    %c0_4 = arith.constant 0 : index
    %c0_5 = arith.constant 0 : index
    %24 = vector.load %arg1[%c0_4, %c0_5] : memref<8x1xi32, #tpu.memory_space<vmem>>, vector<8x1xi32>
    %25 = vector.broadcast %24 : vector<8x1xi32> to vector<8x27xi32>
    %26 = arith.cmpi eq, %23, %25 : vector<8x27xi32>
    %27 = arith.extui %26 : vector<8x27xi1> to vector<8x27xi32>
    %28 = arith.sitofp %27 : vector<8x27xi32> to vector<8x27xf32>
    %cst_6 = arith.constant dense<0.000000e+00> : vector<8x64xf32>
    %29 = tpu.matmul %28, %18, %cst_6 {dimension_numbers = #tpu.dot_dimension_numbers<[1], [0], [0], [1], [0, 0, 1, 1], [], []>} : vector<8x27xf32>, vector<27x64xf32>, vector<8x64xf32> -> vector<8x64xf32>
    %30 = vector.extract_strided_slice %29 {offsets = [0, 0], sizes = [8, 32], strides = [1, 1]} : vector<8x64xf32> to vector<8x32xf32>
    %c0_7 = arith.constant 0 : index
    %c0_8 = arith.constant 0 : index
    %31 = vector.load %arg4[%c0_7, %c0_8] : memref<64x32xf32, #tpu.memory_space<vmem>>, vector<64x32xf32>
    %cst_9 = arith.constant dense<0.000000e+00> : vector<64x32xf32>
    %32 = tpu.matmul %19, %31, %cst_9 {dimension_numbers = #tpu.dot_dimension_numbers<[1], [0], [0], [1], [0, 0, 1, 1], [], []>} : vector<64x64xf32>, vector<64x32xf32>, vector<64x32xf32> -> vector<64x32xf32>
    %cst_10 = arith.constant 0.000000e+00 : f32
    %33 = vector.broadcast %cst_10 : f32 to vector<64x32xf32>
    %34 = arith.maximumf %32, %33 : vector<64x32xf32>
    %c0_11 = arith.constant 0 : index
    %c0_12 = arith.constant 0 : index
    %35 = vector.load %arg5[%c0_11, %c0_12] : memref<32x32xf32, #tpu.memory_space<vmem>>, vector<32x32xf32>
    %cst_13 = arith.constant dense<0.000000e+00> : vector<64x32xf32>
    %36 = tpu.matmul %34, %35, %cst_13 {dimension_numbers = #tpu.dot_dimension_numbers<[1], [0], [0], [1], [0, 0, 1, 1], [], []>} : vector<64x32xf32>, vector<32x32xf32>, vector<64x32xf32> -> vector<64x32xf32>
    %cst_14 = arith.constant 0.000000e+00 : f32
    %37 = vector.broadcast %cst_14 : f32 to vector<64x32xf32>
    %38 = arith.maximumf %36, %37 : vector<64x32xf32>
    %c0_15 = arith.constant 0 : index
    %c0_16 = arith.constant 0 : index
    %39 = vector.load %arg6[%c0_15, %c0_16] : memref<1x32xf32, #tpu.memory_space<vmem>>, vector<1x32xf32>
    %40 = vector.broadcast %39 : vector<1x32xf32> to vector<64x32xf32>
    %41 = arith.mulf %38, %40 : vector<64x32xf32>
    %cst_17 = arith.constant dense<0.000000e+00> : vector<64xf32>
    %42 = vector.multi_reduction <add>, %41, %cst_17 [1] : vector<64x32xf32> to vector<64xf32>
    %43 = vector.shape_cast %42 : vector<64xf32> to vector<64x1xf32>
    %cst_18 = arith.constant 0.000000e+00 : f32
    %44 = vector.broadcast %cst_18 : f32 to vector<64x1xf32>
    %45 = arith.subf %44, %43 : vector<64x1xf32>
    %46 = math.exp %45 : vector<64x1xf32>
    %cst_19 = arith.constant 1.000000e+00 : f32
    %47 = vector.broadcast %cst_19 : f32 to vector<64x1xf32>
    %48 = arith.addf %47, %46 : vector<64x1xf32>
    %49 = tpu.reciprocal %48 {approx = true} : vector<64x1xf32> -> vector<64x1xf32>
    %50 = math.exp %49 : vector<64x1xf32>
    %51 = tpu.iota {dimensions = array<i32: 1>} : vector<8x64xi32>
    %52 = tpu.iota {dimensions = array<i32: 0>} : vector<8x64xi32>
    %c8_i32 = arith.constant 8 : i32
    %53 = vector.broadcast %c8_i32 : i32 to vector<8x64xi32>
    %54 = arith.muli %52, %53 : vector<8x64xi32>
    %55 = arith.subi %51, %54 : vector<8x64xi32>
    %c0_i32 = arith.constant 0 : i32
    %56 = vector.broadcast %c0_i32 : i32 to vector<8x64xi32>
    %57 = arith.cmpi sge, %55, %56 : vector<8x64xi32>
    %c8_i32_20 = arith.constant 8 : i32
    %58 = vector.broadcast %c8_i32_20 : i32 to vector<8x64xi32>
    %59 = arith.cmpi slt, %55, %58 : vector<8x64xi32>
    %60 = arith.andi %57, %59 : vector<8x64xi1>
    %61 = arith.extui %60 : vector<8x64xi1> to vector<8x64xi32>
    %62 = arith.sitofp %61 : vector<8x64xi32> to vector<8x64xf32>
    %63 = vector.broadcast %50 : vector<64x1xf32> to vector<64x32xf32>
    %64 = arith.mulf %63, %22 : vector<64x32xf32>
    %cst_21 = arith.constant dense<0.000000e+00> : vector<8x32xf32>
    %65 = tpu.matmul %62, %64, %cst_21 {dimension_numbers = #tpu.dot_dimension_numbers<[1], [0], [0], [1], [0, 0, 1, 1], [], []>} : vector<8x64xf32>, vector<64x32xf32>, vector<8x32xf32> -> vector<8x32xf32>
    %66 = vector.shape_cast %50 : vector<64x1xf32> to vector<64x1xf32>
    %67 = vector.broadcast %66 : vector<64x1xf32> to vector<64x32xf32>
    %cst_22 = arith.constant dense<0.000000e+00> : vector<8x32xf32>
    %68 = tpu.matmul %62, %67, %cst_22 {dimension_numbers = #tpu.dot_dimension_numbers<[1], [0], [0], [1], [0, 0, 1, 1], [], []>} : vector<8x64xf32>, vector<64x32xf32>, vector<8x32xf32> -> vector<8x32xf32>
    %69 = tpu.reciprocal %68 {approx = true} : vector<8x32xf32> -> vector<8x32xf32>
    %70 = arith.mulf %65, %69 : vector<8x32xf32>
    %71 = tpu.iota {dimensions = array<i32: 1>} : vector<8x64xi32>
    %72 = tpu.iota {dimensions = array<i32: 0>} : vector<8x64xi32>
    %c8_i32_23 = arith.constant 8 : i32
    %73 = vector.broadcast %c8_i32_23 : i32 to vector<8x64xi32>
    %74 = arith.muli %72, %73 : vector<8x64xi32>
    %75 = arith.subi %71, %74 : vector<8x64xi32>
    %c0_i32_24 = arith.constant 0 : i32
    %76 = vector.broadcast %c0_i32_24 : i32 to vector<8x64xi32>
    %77 = arith.cmpi sge, %75, %76 : vector<8x64xi32>
    %c8_i32_25 = arith.constant 8 : i32
    %78 = vector.broadcast %c8_i32_25 : i32 to vector<8x64xi32>
    %79 = arith.cmpi slt, %75, %78 : vector<8x64xi32>
    %80 = arith.andi %77, %79 : vector<8x64xi1>
    %81 = arith.extui %80 : vector<8x64xi1> to vector<8x64xi32>
    %82 = arith.sitofp %81 : vector<8x64xi32> to vector<8x64xf32>
    %cst_26 = arith.constant dense<0.000000e+00> : vector<8x32xf32>
    %83 = tpu.matmul %82, %20, %cst_26 {dimension_numbers = #tpu.dot_dimension_numbers<[1], [0], [0], [1], [0, 0, 1, 1], [], []>} : vector<8x64xf32>, vector<64x32xf32>, vector<8x32xf32> -> vector<8x32xf32>
    %cst_27 = arith.constant 1.250000e-01 : f32
    %84 = vector.broadcast %cst_27 : f32 to vector<8x32xf32>
    %85 = arith.mulf %83, %84 : vector<8x32xf32>
    %86 = vector.extract_strided_slice %70 {offsets = [0, 0], sizes = [4, 32], strides = [1, 1]} : vector<8x32xf32> to vector<4x32xf32>
    %87 = vector.extract_strided_slice %70 {offsets = [4, 0], sizes = [4, 32], strides = [1, 1]} : vector<8x32xf32> to vector<4x32xf32>
    %88 = arith.mulf %86, %87 : vector<4x32xf32>
    %89 = tpu.iota {dimensions = array<i32: 1>} : vector<8x4xi32>
    %90 = tpu.iota {dimensions = array<i32: 0>} : vector<8x4xi32>
    %cst_28 = arith.constant 0.000000e+00 : f32
    %91 = vector.broadcast %cst_28 : f32 to vector<8x4xf32>
    %c0_i32_29 = arith.constant 0 : i32
    %92 = vector.broadcast %c0_i32_29 : i32 to vector<8x4xi32>
    %93 = arith.addi %90, %92 : vector<8x4xi32>
    %94 = arith.cmpi eq, %89, %93 : vector<8x4xi32>
    %95 = arith.extui %94 : vector<8x4xi1> to vector<8x4xi32>
    %96 = arith.sitofp %95 : vector<8x4xi32> to vector<8x4xf32>
    %97 = arith.addf %91, %96 : vector<8x4xf32>
    %c2_i32 = arith.constant 2 : i32
    %98 = vector.broadcast %c2_i32 : i32 to vector<8x4xi32>
    %99 = arith.addi %90, %98 : vector<8x4xi32>
    %100 = arith.cmpi eq, %89, %99 : vector<8x4xi32>
    %101 = arith.extui %100 : vector<8x4xi1> to vector<8x4xi32>
    %102 = arith.sitofp %101 : vector<8x4xi32> to vector<8x4xf32>
    %103 = arith.addf %97, %102 : vector<8x4xf32>
    %cst_30 = arith.constant dense<0.000000e+00> : vector<8x32xf32>
    %104 = tpu.matmul %103, %88, %cst_30 {dimension_numbers = #tpu.dot_dimension_numbers<[1], [0], [0], [1], [0, 0, 1, 1], [], []>} : vector<8x4xf32>, vector<4x32xf32>, vector<8x32xf32> -> vector<8x32xf32>
    %105 = arith.mulf %85, %30 : vector<8x32xf32>
    %106 = arith.addf %105, %104 : vector<8x32xf32>
    %cst_31 = arith.constant dense<0.000000e+00> : vector<8xf32>
    %107 = vector.multi_reduction <add>, %106, %cst_31 [1] : vector<8x32xf32> to vector<8xf32>
    %108 = vector.shape_cast %107 : vector<8xf32> to vector<8x1xf32>
    %cst_32 = arith.constant 0.000000e+00 : f32
    %109 = vector.broadcast %cst_32 : f32 to vector<8x1xf32>
    %110 = arith.subf %109, %108 : vector<8x1xf32>
    %111 = math.exp %110 : vector<8x1xf32>
    %cst_33 = arith.constant 1.000000e+00 : f32
    %112 = vector.broadcast %cst_33 : f32 to vector<8x1xf32>
    %113 = arith.addf %112, %111 : vector<8x1xf32>
    %114 = tpu.reciprocal %113 {approx = true} : vector<8x1xf32> -> vector<8x1xf32>
    %cst_34 = arith.constant 0.000000e+00 : f32
    %115 = vector.broadcast %cst_34 : f32 to vector<8x1xf32>
    %116 = arith.subf %115, %108 : vector<8x1xf32>
    %cst_35 = arith.constant 0.000000e+00 : f32
    %117 = vector.broadcast %cst_35 : f32 to vector<8x1xf32>
    %118 = arith.maximumf %116, %117 : vector<8x1xf32>
    %119 = math.absf %116 : vector<8x1xf32>
    %cst_36 = arith.constant 0.000000e+00 : f32
    %120 = vector.broadcast %cst_36 : f32 to vector<8x1xf32>
    %121 = arith.subf %120, %119 : vector<8x1xf32>
    %122 = math.exp %121 : vector<8x1xf32>
    %cst_37 = arith.constant 1.000000e+00 : f32
    %123 = vector.broadcast %cst_37 : f32 to vector<8x1xf32>
    %124 = arith.addf %123, %122 : vector<8x1xf32>
    %125 = math.log %124 : vector<8x1xf32>
    %126 = arith.addf %118, %125 : vector<8x1xf32>
    %cst_38 = arith.constant 0.000000e+00 : f32
    %127 = vector.broadcast %cst_38 : f32 to vector<8x1xf32>
    %128 = arith.subf %127, %126 : vector<8x1xf32>
    %cst_39 = arith.constant -1.000000e+02 : f32
    %129 = vector.broadcast %cst_39 : f32 to vector<8x1xf32>
    %130 = arith.maximumf %128, %129 : vector<8x1xf32>
    %cst_40 = arith.constant 0.000000e+00 : f32
    %131 = vector.broadcast %cst_40 : f32 to vector<8x1xf32>
    %132 = arith.maximumf %108, %131 : vector<8x1xf32>
    %133 = math.absf %108 : vector<8x1xf32>
    %cst_41 = arith.constant 0.000000e+00 : f32
    %134 = vector.broadcast %cst_41 : f32 to vector<8x1xf32>
    %135 = arith.subf %134, %133 : vector<8x1xf32>
    %136 = math.exp %135 : vector<8x1xf32>
    %cst_42 = arith.constant 1.000000e+00 : f32
    %137 = vector.broadcast %cst_42 : f32 to vector<8x1xf32>
    %138 = arith.addf %137, %136 : vector<8x1xf32>
    %139 = math.log %138 : vector<8x1xf32>
    %140 = arith.addf %132, %139 : vector<8x1xf32>
    %cst_43 = arith.constant 0.000000e+00 : f32
    %141 = vector.broadcast %cst_43 : f32 to vector<8x1xf32>
    %142 = arith.subf %141, %140 : vector<8x1xf32>
    %cst_44 = arith.constant -1.000000e+02 : f32
    %143 = vector.broadcast %cst_44 : f32 to vector<8x1xf32>
    %144 = arith.maximumf %142, %143 : vector<8x1xf32>
    %c0_45 = arith.constant 0 : index
    %c0_46 = arith.constant 0 : index
    %145 = vector.load %arg2[%c0_45, %c0_46] : memref<8x1xf32, #tpu.memory_space<vmem>>, vector<8x1xf32>
    %146 = tpu.iota {dimensions = array<i32: 0>} : vector<8x1xi32>
    %c2_i32_47 = arith.constant 2 : i32
    %147 = vector.broadcast %c2_i32_47 : i32 to vector<8x1xi32>
    %148 = arith.cmpi slt, %146, %147 : vector<8x1xi32>
    %149 = arith.extui %148 : vector<8x1xi1> to vector<8x1xi32>
    %150 = arith.sitofp %149 : vector<8x1xi32> to vector<8x1xf32>
    %151 = arith.mulf %145, %130 : vector<8x1xf32>
    %cst_48 = arith.constant 1.000000e+00 : f32
    %152 = vector.broadcast %cst_48 : f32 to vector<8x1xf32>
    %153 = arith.subf %152, %145 : vector<8x1xf32>
    %154 = arith.mulf %153, %144 : vector<8x1xf32>
    %155 = arith.addf %151, %154 : vector<8x1xf32>
    %cst_49 = arith.constant 0.000000e+00 : f32
    %156 = vector.broadcast %cst_49 : f32 to vector<8x1xf32>
    %157 = arith.subf %156, %155 : vector<8x1xf32>
    %158 = arith.mulf %157, %150 : vector<8x1xf32>
    %cst_50 = arith.constant dense<0.000000e+00> : vector<1xf32>
    %159 = vector.multi_reduction <add>, %158, %cst_50 [0] : vector<8x1xf32> to vector<1xf32>
    %160 = vector.shape_cast %159 : vector<1xf32> to vector<1x1xf32>
    %cst_51 = arith.constant 5.000000e-01 : f32
    %161 = vector.broadcast %cst_51 : f32 to vector<1x1xf32>
    %162 = arith.mulf %160, %161 : vector<1x1xf32>
    %163 = tpu.iota {dimensions = array<i32: 0>} : vector<8x128xi32>
    %c2_i32_52 = arith.constant 2 : i32
    %164 = vector.broadcast %c2_i32_52 : i32 to vector<8x128xi32>
    %165 = arith.cmpi slt, %163, %164 : vector<8x128xi32>
    %166 = vector.shape_cast %114 : vector<8x1xf32> to vector<8x1xf32>
    %167 = vector.broadcast %166 : vector<8x1xf32> to vector<8x128xf32>
    %168 = vector.shape_cast %162 : vector<1x1xf32> to vector<1x1xf32>
    %169 = vector.broadcast %168 : vector<1x1xf32> to vector<8x128xf32>
    %170 = arith.select %165, %167, %169 : vector<8x128xi1>, vector<8x128xf32>
    %c0_53 = arith.constant 0 : index
    %c0_54 = arith.constant 0 : index
    %171 = vector.load %arg7[%c0_53, %c0_54] : memref<8x128xf32, #tpu.memory_space<vmem>>, vector<8x128xf32>
    tpu.vector_store %arg7[%c0_53, %c0_54], %170 {strides = array<i32>} : memref<8x128xf32, #tpu.memory_space<vmem>>, vector<8x128xf32>,
    return
  }
}

</mosaic_0001>

<llo_original>
// kernel: squeeze.8
$region0: #{squeeze.8}
  %s0 = inlined_call_operand.vmem [shape: s32[1,2,2,8], index: 0, kind: input, shape index: {}]
  %s1 = inlined_call_operand.vmem [shape: s32[32], index: 1, kind: output, shape index: {}]
  $region1: #{squeeze.8} parent=0
    #allocation0 [shape = 'u8[4096]{0}', space=vmem, size = 0x1000, scoped, tag = 'scoped mem for output reshape']
    #allocation1 [shape = 'u8[8192]{0}', space=vmem, size = 0x2000, scoped, tag = 'scoped mem for input reshape']
    %s3 = sshllo.u32 0, 2
    %s4 = scalar_lea.vmem %s0, 2
    %v5 = vld [vmem:[%s4] sm:%s3]
    %s6 = scalar_lea.vmem [#allocation1], 8
    %7 = vst [vmem:[%s6] sm:%s3] %v5
    %v8 = vld [vmem:[%s0] sm:%s3]
    %9 = vst [vmem:[#allocation1] sm:%s3] %v8
    %v10 = vld [vmem:[#allocation1] sm:$0x1]
    %vm11 = vcmask 64512
    %12 = vst.msk [vmem:[#allocation0] sm:$0x1] %vm11, %v10
    %s13 = scalar_lea.vmem [#allocation1], 9
    %v14 = vld [vmem:[%s13] sm:$0x1]
    %15 = vrot.lane.b32.xlu0 %v14, 24
    %v16 = vpop.permute.xlu0 %15
    %vm17 = vcmask 261312
    %18 = vst.msk [vmem:[#allocation0] sm:$0x1] %vm17, %v16
    %s19 = scalar_lea.vmem [#allocation1], 8
    %v20 = vld [vmem:[%s19] sm:$0x1]
    %21 = vrot.lane.b32.xlu0 %v20, 16
    %v22 = vpop.permute.xlu0 %21
    %vm23 = vcmask 195712
    %24 = vst.msk [vmem:[#allocation0] sm:$0x1] %vm23, %v22
    %s25 = scalar_lea.vmem [#allocation1], 1
    %v26 = vld [vmem:[%s25] sm:$0x1]
    %27 = vrot.lane.b32.xlu0 %v26, 8
    %v28 = vpop.permute.xlu0 %27
    %vm29 = vcmask 130112
    %30 = vst.msk [vmem:[#allocation0] sm:$0x1] %vm29, %v28
    %s32 = sshllo.u32 0, 1
    %v34 = vld [vmem:[#allocation0] sm:%s32]
    %s35 = sshllo.u32 0, 1
    %36 = vst [vmem:[%s1] sm:%s35] %v34

// kernel: ckan_forward.1
$region0: #{ckan_forward.1}
  #allocation0 [shape = 'u32[]', space=smem, size = 0x4, offset = 0x4, fixed_abs, tag = 'smem constant byte address 0x4 - core index']
  #allocation1 [shape = 'u32[144,128]{1,0:T(1,128)}', space=vmem, size = 0x12000, scoped, tag = 'internal scratch']
  %s0 = inlined_call_operand.vmem [shape: s32[64,3], index: 0, kind: input, shape index: {}]
  %s1 = inlined_call_operand.vmem [shape: s32[8,1], index: 1, kind: input, shape index: {}]
  %s2 = inlined_call_operand.vmem [shape: f32[8,1], index: 2, kind: input, shape index: {}]
  %s3 = inlined_call_operand.vmem [shape: f32[27,64], index: 3, kind: input, shape index: {}]
  %s4 = inlined_call_operand.vmem [shape: f32[64,32], index: 4, kind: input, shape index: {}]
  %s5 = inlined_call_operand.vmem [shape: f32[32,32], index: 5, kind: input, shape index: {}]
  %s6 = inlined_call_operand.vmem [shape: f32[1,32], index: 6, kind: input, shape index: {}]
  %s7 = inlined_call_operand.vmem [shape: f32[8,128], index: 7, kind: output, shape index: {}]
  %s8 = sld [smem:[#allocation0]]
  $region38: #{ckan_forward.1} parent=0
    _
  %s10 = ssub.s32 1, %s8
  %s11 = scalar_select 0, %s10, %s8
  // Predicated region
  $region2: #{ckan_forward.1} parent=0 // pred_check
    _
  $region3: #{ckan_forward.1} parent=0 // pred_check_branch
    %13 = sbr.rel (0) target = $region5
  $region4: #{ckan_forward.1} parent=0 // pred_region
    _
  $region5: #{ckan_forward.1} parent=0 // pred_fallthru
    _
  // Predicated region
  $region6: #{ckan_forward.1} parent=0 // pred_check
    _
  $region7: #{ckan_forward.1} parent=0 // pred_check_branch
    %15 = sbr.rel (0) target = $region9
  $region8: #{ckan_forward.1} parent=0 // pred_region
    _
  $region9: #{ckan_forward.1} parent=0 // pred_fallthru
    _
  // Predicated region
  $region10: #{ckan_forward.1} parent=0 // pred_check
    _
  $region11: #{ckan_forward.1} parent=0 // pred_check_branch
    %17 = sbr.rel (0) target = $region13
  $region12: #{ckan_forward.1} parent=0 // pred_region
    _
  $region13: #{ckan_forward.1} parent=0 // pred_fallthru
    _
  // Predicated region
  $region14: #{ckan_forward.1} parent=0 // pred_check
    _
  $region15: #{ckan_forward.1} parent=0 // pred_check_branch
    %19 = sbr.rel (0) target = $region17
  $region16: #{ckan_forward.1} parent=0 // pred_region
    _
  $region17: #{ckan_forward.1} parent=0 // pred_fallthru
    _
  // Predicated region
  $region18: #{ckan_forward.1} parent=0 // pred_check
    _
  $region19: #{ckan_forward.1} parent=0 // pred_check_branch
    %21 = sbr.rel (0) target = $region21
  $region20: #{ckan_forward.1} parent=0 // pred_region
    _
  $region21: #{ckan_forward.1} parent=0 // pred_fallthru
    _
  // Predicated region
  $region22: #{ckan_forward.1} parent=0 // pred_check
    _
  $region23: #{ckan_forward.1} parent=0 // pred_check_branch
    %23 = sbr.rel (0) target = $region25
  $region24: #{ckan_forward.1} parent=0 // pred_region
    _
  $region25: #{ckan_forward.1} parent=0 // pred_fallthru
    _
  // Predicated region
  $region26: #{ckan_forward.1} parent=0 // pred_check
    _
  $region27: #{ckan_forward.1} parent=0 // pred_check_branch
    %25 = sbr.rel (0) target = $region29
  $region28: #{ckan_forward.1} parent=0 // pred_region
    _
  $region29: #{ckan_forward.1} parent=0 // pred_fallthru
    _
  %v26 = vld [vmem:[%s0] sm:$0xff]
  %v27 = vld [vmem:[%s0 + $0x8] sm:$0xff]
  %v28 = vld [vmem:[%s0 + $0x10] sm:$0xff]
  %v29 = vld [vmem:[%s0 + $0x18] sm:$0xff]
  %v30 = vld [vmem:[%s0 + $0x20] sm:$0xff]
  %v31 = vld [vmem:[%s0 + $0x28] sm:$0xff]
  %v32 = vld [vmem:[%s0 + $0x30] sm:$0xff]
  %v33 = vld [vmem:[%s0 + $0x38] sm:$0xff]
  %v34 = vlaneseq
  %v35 = vand.u32 %v34, 127
  %36 = vset.pattern.permute.xlu0 0
  %37 = vperm.xlu0 %36, %v26
  %v38 = vpop.permute.xlu0 %37
  %39 = vset.pattern.permute.xlu0 0
  %40 = vperm.xlu0 %39, %v27
  %v41 = vpop.permute.xlu0 %40
  %42 = vset.pattern.permute.xlu0 0
  %43 = vperm.xlu0 %42, %v28
  %v44 = vpop.permute.xlu0 %43
  %45 = vset.pattern.permute.xlu0 0
  %46 = vperm.xlu0 %45, %v29
  %v47 = vpop.permute.xlu0 %46
  %48 = vset.pattern.permute.xlu0 0
  %49 = vperm.xlu0 %48, %v30
  %v50 = vpop.permute.xlu0 %49
  %51 = vset.pattern.permute.xlu0 0
  %52 = vperm.xlu0 %51, %v31
  %v53 = vpop.permute.xlu0 %52
  %54 = vset.pattern.permute.xlu0 0
  %55 = vperm.xlu0 %54, %v32
  %v56 = vpop.permute.xlu0 %55
  %57 = vset.pattern.permute.xlu0 0
  %58 = vperm.xlu0 %57, %v33
  %v59 = vpop.permute.xlu0 %58
  %vm60 = vcmp.eq.s32.totalorder %v35, %v38
  %vm61 = vcmp.eq.s32.totalorder %v35, %v41
  %vm62 = vcmp.eq.s32.totalorder %v35, %v44
  %vm63 = vcmp.eq.s32.totalorder %v35, %v47
  %vm64 = vcmp.eq.s32.totalorder %v35, %v50
  %vm65 = vcmp.eq.s32.totalorder %v35, %v53
  %vm66 = vcmp.eq.s32.totalorder %v35, %v56
  %vm67 = vcmp.eq.s32.totalorder %v35, %v59
  %v68 = vsel %vm60, 1, 0
  %v69 = vsel %vm61, 1, 0
  %v70 = vsel %vm62, 1, 0
  %v71 = vsel %vm63, 1, 0
  %v72 = vsel %vm64, 1, 0
  %v73 = vsel %vm65, 1, 0
  %v74 = vsel %vm66, 1, 0
  %v75 = vsel %vm67, 1, 0
  %v76 = vcvt.s32.f32 %v68
  %v77 = vcvt.s32.f32 %v69
  %v78 = vcvt.s32.f32 %v70
  %v79 = vcvt.s32.f32 %v71
  %v80 = vcvt.s32.f32 %v72
  %v81 = vcvt.s32.f32 %v73
  %v82 = vcvt.s32.f32 %v74
  %v83 = vcvt.s32.f32 %v75
  %84 = vset.pattern.permute.xlu0 1
  %85 = vperm.xlu0 %84, %v26
  %v86 = vpop.permute.xlu0 %85
  %87 = vset.pattern.permute.xlu0 1
  %88 = vperm.xlu0 %87, %v27
  %v89 = vpop.permute.xlu0 %88
  %90 = vset.pattern.permute.xlu0 1
  %91 = vperm.xlu0 %90, %v28
  %v92 = vpop.permute.xlu0 %91
  %93 = vset.pattern.permute.xlu0 1
  %94 = vperm.xlu0 %93, %v29
  %v95 = vpop.permute.xlu0 %94
  %96 = vset.pattern.permute.xlu0 1
  %97 = vperm.xlu0 %96, %v30
  %v98 = vpop.permute.xlu0 %97
  %99 = vset.pattern.permute.xlu0 1
  %100 = vperm.xlu0 %99, %v31
  %v101 = vpop.permute.xlu0 %100
  %102 = vset.pattern.permute.xlu0 1
  %103 = vperm.xlu0 %102, %v32
  %v104 = vpop.permute.xlu0 %103
  %105 = vset.pattern.permute.xlu0 1
  %106 = vperm.xlu0 %105, %v33
  %v107 = vpop.permute.xlu0 %106
  %vm108 = vcmp.eq.s32.totalorder %v35, %v86
  %vm109 = vcmp.eq.s32.totalorder %v35, %v89
  %vm110 = vcmp.eq.s32.totalorder %v35, %v92
  %vm111 = vcmp.eq.s32.totalorder %v35, %v95
  %vm112 = vcmp.eq.s32.totalorder %v35, %v98
  %vm113 = vcmp.eq.s32.totalorder %v35, %v101
  %vm114 = vcmp.eq.s32.totalorder %v35, %v104
  %vm115 = vcmp.eq.s32.totalorder %v35, %v107
  %v116 = vsel %vm108, 1, 0
  %v117 = vsel %vm109, 1, 0
  %v118 = vsel %vm110, 1, 0
  %v119 = vsel %vm111, 1, 0
  %v120 = vsel %vm112, 1, 0
  %v121 = vsel %vm113, 1, 0
  %v122 = vsel %vm114, 1, 0
  %v123 = vsel %vm115, 1, 0
  %v124 = vcvt.s32.f32 %v116
  %v125 = vcvt.s32.f32 %v117
  %v126 = vcvt.s32.f32 %v118
  %v127 = vcvt.s32.f32 %v119
  %v128 = vcvt.s32.f32 %v120
  %v129 = vcvt.s32.f32 %v121
  %v130 = vcvt.s32.f32 %v122
  %v131 = vcvt.s32.f32 %v123
  %132 = vset.pattern.permute.xlu0 2
  %133 = vperm.xlu0 %132, %v26
  %v134 = vpop.permute.xlu0 %133
  %135 = vset.pattern.permute.xlu0 2
  %136 = vperm.xlu0 %135, %v27
  %v137 = vpop.permute.xlu0 %136
  %138 = vset.pattern.permute.xlu0 2
  %139 = vperm.xlu0 %138, %v28
  %v140 = vpop.permute.xlu0 %139
  %141 = vset.pattern.permute.xlu0 2
  %142 = vperm.xlu0 %141, %v29
  %v143 = vpop.permute.xlu0 %142
  %144 = vset.pattern.permute.xlu0 2
  %145 = vperm.xlu0 %144, %v30
  %v146 = vpop.permute.xlu0 %145
  %147 = vset.pattern.permute.xlu0 2
  %148 = vperm.xlu0 %147, %v31
  %v149 = vpop.permute.xlu0 %148
  %150 = vset.pattern.permute.xlu0 2
  %151 = vperm.xlu0 %150, %v32
  %v152 = vpop.permute.xlu0 %151
  %153 = vset.pattern.permute.xlu0 2
  %154 = vperm.xlu0 %153, %v33
  %v155 = vpop.permute.xlu0 %154
  %vm156 = vcmp.eq.s32.totalorder %v35, %v134
  %vm157 = vcmp.eq.s32.totalorder %v35, %v137
  %vm158 = vcmp.eq.s32.totalorder %v35, %v140
  %vm159 = vcmp.eq.s32.totalorder %v35, %v143
  %vm160 = vcmp.eq.s32.totalorder %v35, %v146
  %vm161 = vcmp.eq.s32.totalorder %v35, %v149
  %vm162 = vcmp.eq.s32.totalorder %v35, %v152
  %vm163 = vcmp.eq.s32.totalorder %v35, %v155
  %v164 = vsel %vm156, 1, 0
  %v165 = vsel %vm157, 1, 0
  %v166 = vsel %vm158, 1, 0
  %v167 = vsel %vm159, 1, 0
  %v168 = vsel %vm160, 1, 0
  %v169 = vsel %vm161, 1, 0
  %v170 = vsel %vm162, 1, 0
  %v171 = vsel %vm163, 1, 0
  %v172 = vcvt.s32.f32 %v164
  %v173 = vcvt.s32.f32 %v165
  %v174 = vcvt.s32.f32 %v166
  %v175 = vcvt.s32.f32 %v167
  %v176 = vcvt.s32.f32 %v168
  %v177 = vcvt.s32.f32 %v169
  %v178 = vcvt.s32.f32 %v170
  %v179 = vcvt.s32.f32 %v171
  %v180 = vadd.f32 %v76, %v124
  %v181 = vadd.f32 %v77, %v125
  %v182 = vadd.f32 %v78, %v126
  %v183 = vadd.f32 %v79, %v127
  %v184 = vadd.f32 %v80, %v128
  %v185 = vadd.f32 %v81, %v129
  %v186 = vadd.f32 %v82, %v130
  %v187 = vadd.f32 %v83, %v131
  %v188 = vld [vmem:[%s3] sm:$0xff]
  %v189 = vld [vmem:[%s3 + $0x8] sm:$0xff]
  %v190 = vld [vmem:[%s3 + $0x10] sm:$0xff]
  %v191 = vld [vmem:[%s3 + $0x18] sm:$0x7]
  %vm192 = vcmask 220160
  %v194 = vsel %vm192, %v180, 0
  %v197 = vsel %vm192, %v181, 0
  %v200 = vsel %vm192, %v182, 0
  %v203 = vsel %vm192, %v183, 0
  %v206 = vsel %vm192, %v184, 0
  %v209 = vsel %vm192, %v185, 0
  %v212 = vsel %vm192, %v186, 0
  %v215 = vsel %vm192, %v187, 0
  %vm217 = vcmask 1042432
  %v219 = vsel %vm217, %v191, 0
  %221 = vmatprep.subr.mxu0 0.0
  %222 = vmatpush1.msra.mxu0 %v188
  %223 = vmatprep.subr.mxu0 0.0
  %224 = vmatpush1.msra.mxu0 %v189
  %225 = vmatprep.subr.mxu0 0.0
  %226 = vmatpush1.msra.mxu0 %v190
  %227 = vmatprep.subr.mxu0 0.0
  %228 = vmatpush1.msra.mxu0 %v219
  %229 = vmatprep.subr.mxu0 0.0
  %230 = vmatpush1.msra.mxu0 0.0
  %231 = vmatprep.subr.mxu0 0.0
  %232 = vmatpush1.msra.mxu0 0.0
  %233 = vmatprep.subr.mxu0 0.0
  %234 = vmatpush1.msra.mxu0 0.0
  %235 = vmatprep.subr.mxu0 0.0
  %236 = vmatpush1.msra.mxu0 0.0
  %237 = vmatprep.subr.mxu0 0.0
  %238 = vmatpush1.msra.mxu0 0.0
  %239 = vmatprep.subr.mxu0 0.0
  %240 = vmatpush1.msra.mxu0 0.0
  %241 = vmatprep.subr.mxu0 0.0
  %242 = vmatpush1.msra.mxu0 0.0
  %243 = vmatprep.subr.mxu0 0.0
  %244 = vmatpush1.msra.mxu0 0.0
  %245 = vmatprep.subr.mxu0 0.0
  %246 = vmatpush1.msra.mxu0 0.0
  %247 = vmatprep.subr.mxu0 0.0
  %248 = vmatpush1.msra.mxu0 0.0
  %249 = vmatprep.subr.mxu0 0.0
  %250 = vmatpush1.msra.mxu0 0.0
  %251 = vmatprep.subr.mxu0 0.0
  %252 = vmatpush1.msra.mxu0 0.0
  %253 = vmatprep.subr.mxu0 0.0
  %254 = vmatpush1.msra.mxu0 0.0
  %255 = vmatprep.subr.mxu0 0.0
  %256 = vmatpush1.msra.mxu0 0.0
  %257 = vmatprep.subr.mxu0 0.0
  %258 = vmatpush1.msra.mxu0 0.0
  %259 = vmatprep.subr.mxu0 0.0
  %260 = vmatpush1.msra.mxu0 0.0
  %261 = vmatprep.subr.mxu0 0.0
  %262 = vmatpush1.msra.mxu0 0.0
  %263 = vmatprep.subr.mxu0 0.0
  %264 = vmatpush1.msra.mxu0 0.0
  %265 = vmatprep.subr.mxu0 0.0
  %266 = vmatpush1.msra.mxu0 0.0
  %267 = vmatprep.subr.mxu0 0.0
  %268 = vmatpush1.msra.mxu0 0.0
  %269 = vmatprep.subr.mxu0 0.0
  %270 = vmatpush1.msra.mxu0 0.0
  %271 = vmatprep.subr.mxu0 0.0
  %272 = vmatpush1.msra.mxu0 0.0
  %273 = vmatprep.subr.mxu0 0.0
  %274 = vmatpush1.msra.mxu0 0.0
  %275 = vmatprep.subr.mxu0 0.0
  %276 = vmatpush1.msra.mxu0 0.0
  %277 = vmatprep.subr.mxu0 0.0
  %278 = vmatpush1.msra.mxu0 0.0
  %279 = vmatprep.subr.mxu0 0.0
  %280 = vmatpush1.msra.mxu0 0.0
  %281 = vmatprep.subr.mxu0 0.0
  %282 = vmatpush1.msra.mxu0 0.0
  %283 = vmatprep.subr.mxu0 0.0
  %284 = vmatpush1.msra.mxu0 0.0
  %285 = vmatprep.mubr.f32.mxu0 0.0
  %286 = vmatmul.mubr.f32.gmra.mrb[0].mxu0 %v194
  %v287 = vpop.f32.mrb[0].mxu0
  %v288 = vadd.f32 0.0, %v287
  %v289 = vpop.f32.mrb[0].mxu0
  %290 = vmatprep.mubr.f32.mxu0 0.0
  %291 = vmatmul.mubr.f32.gmra.mrb[0].mxu0 %v197
  %v292 = vpop.f32.mrb[0].mxu0
  %v293 = vadd.f32 0.0, %v292
  %v294 = vpop.f32.mrb[0].mxu0
  %295 = vmatprep.mubr.f32.mxu0 0.0
  %296 = vmatmul.mubr.f32.gmra.mrb[0].mxu0 %v200
  %v297 = vpop.f32.mrb[0].mxu0
  %v298 = vadd.f32 0.0, %v297
  %v299 = vpop.f32.mrb[0].mxu0
  %300 = vmatprep.mubr.f32.mxu0 0.0
  %301 = vmatmul.mubr.f32.gmra.mrb[0].mxu0 %v203
  %v302 = vpop.f32.mrb[0].mxu0
  %v303 = vadd.f32 0.0, %v302
  %v304 = vpop.f32.mrb[0].mxu0
  %305 = vmatprep.mubr.f32.mxu0 0.0
  %306 = vmatmul.mubr.f32.gmra.mrb[0].mxu0 %v206
  %v307 = vpop.f32.mrb[0].mxu0
  %v308 = vadd.f32 0.0, %v307
  %v309 = vpop.f32.mrb[0].mxu0
  %310 = vmatprep.mubr.f32.mxu0 0.0
  %311 = vmatmul.mubr.f32.gmra.mrb[0].mxu0 %v209
  %v312 = vpop.f32.mrb[0].mxu0
  %v313 = vadd.f32 0.0, %v312
  %v314 = vpop.f32.mrb[0].mxu0
  %315 = vmatprep.mubr.f32.mxu0 0.0
  %316 = vmatmul.mubr.f32.gmra.mrb[0].mxu0 %v212
  %v317 = vpop.f32.mrb[0].mxu0
  %v318 = vadd.f32 0.0, %v317
  %v319 = vpop.f32.mrb[0].mxu0
  %320 = vmatprep.mubr.f32.mxu0 0.0
  %321 = vmatmul.mubr.f32.gmra.mrb[0].mxu0 %v215
  %v322 = vpop.f32.mrb[0].mxu0
  %v323 = vadd.f32 0.0, %v322
  %v324 = vpop.f32.mrb[0].mxu0
  %325 = vdwg.mxu0
  %v327 = vsel %vm192, %v172, 0
  %v330 = vsel %vm192, %v173, 0
  %v333 = vsel %vm192, %v174, 0
  %v336 = vsel %vm192, %v175, 0
  %v339 = vsel %vm192, %v176, 0
  %v342 = vsel %vm192, %v177, 0
  %v345 = vsel %vm192, %v178, 0
  %v348 = vsel %vm192, %v179, 0
  %350 = vmatprep.subr.mxu0 0.0
  %351 = vmatpush1.msra.mxu0 %v188
  %352 = vmatprep.subr.mxu0 0.0
  %353 = vmatpush1.msra.mxu0 %v189
  %354 = vmatprep.subr.mxu0 0.0
  %355 = vmatpush1.msra.mxu0 %v190
  %356 = vmatprep.subr.mxu0 0.0
  %357 = vmatpush1.msra.mxu0 %v219
  %358 = vmatprep.subr.mxu0 0.0
  %359 = vmatpush1.msra.mxu0 0.0
  %360 = vmatprep.subr.mxu0 0.0
  %361 = vmatpush1.msra.mxu0 0.0
  %362 = vmatprep.subr.mxu0 0.0
  %363 = vmatpush1.msra.mxu0 0.0
  %364 = vmatprep.subr.mxu0 0.0
  %365 = vmatpush1.msra.mxu0 0.0
  %366 = vmatprep.subr.mxu0 0.0
  %367 = vmatpush1.msra.mxu0 0.0
  %368 = vmatprep.subr.mxu0 0.0
  %369 = vmatpush1.msra.mxu0 0.0
  %370 = vmatprep.subr.mxu0 0.0
  %371 = vmatpush1.msra.mxu0 0.0
  %372 = vmatprep.subr.mxu0 0.0
  %373 = vmatpush1.msra.mxu0 0.0
  %374 = vmatprep.subr.mxu0 0.0
  %375 = vmatpush1.msra.mxu0 0.0
  %376 = vmatprep.subr.mxu0 0.0
  %377 = vmatpush1.msra.mxu0 0.0
  %378 = vmatprep.subr.mxu0 0.0
  %379 = vmatpush1.msra.mxu0 0.0
  %380 = vmatprep.subr.mxu0 0.0
  %381 = vmatpush1.msra.mxu0 0.0
  %382 = vmatprep.subr.mxu0 0.0
  %383 = vmatpush1.msra.mxu0 0.0
  %384 = vmatprep.subr.mxu0 0.0
  %385 = vmatpush1.msra.mxu0 0.0
  %386 = vmatprep.subr.mxu0 0.0
  %387 = vmatpush1.msra.mxu0 0.0
  %388 = vmatprep.subr.mxu0 0.0
  %389 = vmatpush1.msra.mxu0 0.0
  %390 = vmatprep.subr.mxu0 0.0
  %391 = vmatpush1.msra.mxu0 0.0
  %392 = vmatprep.subr.mxu0 0.0
  %393 = vmatpush1.msra.mxu0 0.0
  %394 = vmatprep.subr.mxu0 0.0
  %395 = vmatpush1.msra.mxu0 0.0
  %396 = vmatprep.subr.mxu0 0.0
  %397 = vmatpush1.msra.mxu0 0.0
  %398 = vmatprep.subr.mxu0 0.0
  %399 = vmatpush1.msra.mxu0 0.0
  %400 = vmatprep.subr.mxu0 0.0
  %401 = vmatpush1.msra.mxu0 0.0
  %402 = vmatprep.subr.mxu0 0.0
  %403 = vmatpush1.msra.mxu0 0.0
  %404 = vmatprep.subr.mxu0 0.0
  %405 = vmatpush1.msra.mxu0 0.0
  %406 = vmatprep.subr.mxu0 0.0
  %407 = vmatpush1.msra.mxu0 0.0
  %408 = vmatprep.subr.mxu0 0.0
  %409 = vmatpush1.msra.mxu0 0.0
  %410 = vmatprep.subr.mxu0 0.0
  %411 = vmatpush1.msra.mxu0 0.0
  %412 = vmatprep.subr.mxu0 0.0
  %413 = vmatpush1.msra.mxu0 0.0
  %414 = vmatprep.mubr.f32.mxu0 0.0
  %415 = vmatmul.mubr.f32.gmra.mrb[0].mxu0 %v327
  %v416 = vpop.f32.mrb[0].mxu0
  %v417 = vadd.f32 0.0, %v416
  %v418 = vpop.f32.mrb[0].mxu0
  %419 = vmatprep.mubr.f32.mxu0 0.0
  %420 = vmatmul.mubr.f32.gmra.mrb[0].mxu0 %v330
  %v421 = vpop.f32.mrb[0].mxu0
  %v422 = vadd.f32 0.0, %v421
  %v423 = vpop.f32.mrb[0].mxu0
  %424 = vmatprep.mubr.f32.mxu0 0.0
  %425 = vmatmul.mubr.f32.gmra.mrb[0].mxu0 %v333
  %v426 = vpop.f32.mrb[0].mxu0
  %v427 = vadd.f32 0.0, %v426
  %v428 = vpop.f32.mrb[0].mxu0
  %429 = vmatprep.mubr.f32.mxu0 0.0
  %430 = vmatmul.mubr.f32.gmra.mrb[0].mxu0 %v336
  %v431 = vpop.f32.mrb[0].mxu0
  %v432 = vadd.f32 0.0, %v431
  %v433 = vpop.f32.mrb[0].mxu0
  %434 = vmatprep.mubr.f32.mxu0 0.0
  %435 = vmatmul.mubr.f32.gmra.mrb[0].mxu0 %v339
  %v436 = vpop.f32.mrb[0].mxu0
  %v437 = vadd.f32 0.0, %v436
  %v438 = vpop.f32.mrb[0].mxu0
  %439 = vmatprep.mubr.f32.mxu0 0.0
  %440 = vmatmul.mubr.f32.gmra.mrb[0].mxu0 %v342
  %v441 = vpop.f32.mrb[0].mxu0
  %v442 = vadd.f32 0.0, %v441
  %v443 = vpop.f32.mrb[0].mxu0
  %444 = vmatprep.mubr.f32.mxu0 0.0
  %445 = vmatmul.mubr.f32.gmra.mrb[0].mxu0 %v345
  %v446 = vpop.f32.mrb[0].mxu0
  %v447 = vadd.f32 0.0, %v446
  %v448 = vpop.f32.mrb[0].mxu0
  %449 = vmatprep.mubr.f32.mxu0 0.0
  %450 = vmatmul.mubr.f32.gmra.mrb[0].mxu0 %v348
  %v451 = vpop.f32.mrb[0].mxu0
  %v452 = vadd.f32 0.0, %v451
  %v453 = vpop.f32.mrb[0].mxu0
  %454 = vdwg.mxu0
  %v455 = vld [vmem:[%s1] sm:$0xff]
  %456 = vset.pattern.permute.xlu0 0
  %457 = vperm.xlu0 %456, %v455
  %v458 = vpop.permute.xlu0 %457
  %vm459 = vcmp.eq.s32.totalorder %v35, %v458
  %v460 = vsel %vm459, 1, 0
  %v461 = vcvt.s32.f32 %v460
  %v463 = vsel %vm192, %v461, 0
  %465 = vmatprep.subr.mxu0 0.0
  %466 = vmatpush1.msra.mxu0 %v188
  %467 = vmatprep.subr.mxu0 0.0
  %468 = vmatpush1.msra.mxu0 %v189
  %469 = vmatprep.subr.mxu0 0.0
  %470 = vmatpush1.msra.mxu0 %v190
  %471 = vmatprep.subr.mxu0 0.0
  %472 = vmatpush1.msra.mxu0 %v219
  %473 = vmatprep.subr.mxu0 0.0
  %474 = vmatpush1.msra.mxu0 0.0
  %475 = vmatprep.subr.mxu0 0.0
  %476 = vmatpush1.msra.mxu0 0.0
  %477 = vmatprep.subr.mxu0 0.0
  %478 = vmatpush1.msra.mxu0 0.0
  %479 = vmatprep.subr.mxu0 0.0
  %480 = vmatpush1.msra.mxu0 0.0
  %481 = vmatprep.subr.mxu0 0.0
  %482 = vmatpush1.msra.mxu0 0.0
  %483 = vmatprep.subr.mxu0 0.0
  %484 = vmatpush1.msra.mxu0 0.0
  %485 = vmatprep.subr.mxu0 0.0
  %486 = vmatpush1.msra.mxu0 0.0
  %487 = vmatprep.subr.mxu0 0.0
  %488 = vmatpush1.msra.mxu0 0.0
  %489 = vmatprep.subr.mxu0 0.0
  %490 = vmatpush1.msra.mxu0 0.0
  %491 = vmatprep.subr.mxu0 0.0
  %492 = vmatpush1.msra.mxu0 0.0
  %493 = vmatprep.subr.mxu0 0.0
  %494 = vmatpush1.msra.mxu0 0.0
  %495 = vmatprep.subr.mxu0 0.0
  %496 = vmatpush1.msra.mxu0 0.0
  %497 = vmatprep.subr.mxu0 0.0
  %498 = vmatpush1.msra.mxu0 0.0
  %499 = vmatprep.subr.mxu0 0.0
  %500 = vmatpush1.msra.mxu0 0.0
  %501 = vmatprep.subr.mxu0 0.0
  %502 = vmatpush1.msra.mxu0 0.0
  %503 = vmatprep.subr.mxu0 0.0
  %504 = vmatpush1.msra.mxu0 0.0
  %505 = vmatprep.subr.mxu0 0.0
  %506 = vmatpush1.msra.mxu0 0.0
  %507 = vmatprep.subr.mxu0 0.0
  %508 = vmatpush1.msra.mxu0 0.0
  %509 = vmatprep.subr.mxu0 0.0
  %510 = vmatpush1.msra.mxu0 0.0
  %511 = vmatprep.subr.mxu0 0.0
  %512 = vmatpush1.msra.mxu0 0.0
  %513 = vmatprep.subr.mxu0 0.0
  %514 = vmatpush1.msra.mxu0 0.0
  %515 = vmatprep.subr.mxu0 0.0
  %516 = vmatpush1.msra.mxu0 0.0
  %517 = vmatprep.subr.mxu0 0.0
  %518 = vmatpush1.msra.mxu0 0.0
  %519 = vmatprep.subr.mxu0 0.0
  %520 = vmatpush1.msra.mxu0 0.0
  %521 = vmatprep.subr.mxu0 0.0
  %522 = vmatpush1.msra.mxu0 0.0
  %523 = vmatprep.subr.mxu0 0.0
  %524 = vmatpush1.msra.mxu0 0.0
  %525 = vmatprep.subr.mxu0 0.0
  %526 = vmatpush1.msra.mxu0 0.0
  %527 = vmatprep.subr.mxu0 0.0
  %528 = vmatpush1.msra.mxu0 0.0
  %529 = vmatprep.mubr.f32.mxu0 0.0
  %530 = vmatmul.mubr.f32.gmra.mrb[0].mxu0 %v463
  %v531 = vpop.f32.mrb[0].mxu0
  %v532 = vadd.f32 0.0, %v531
  %v533 = vpop.f32.mrb[0].mxu0
  %534 = vdwg.mxu0
  %v535 = vld [vmem:[%s4] sm:$0xff]
  %v536 = vld [vmem:[%s4 + $0x8] sm:$0xff]
  %v537 = vld [vmem:[%s4 + $0x10] sm:$0xff]
  %v538 = vld [vmem:[%s4 + $0x18] sm:$0xff]
  %v539 = vld [vmem:[%s4 + $0x20] sm:$0xff]
  %v540 = vld [vmem:[%s4 + $0x28] sm:$0xff]
  %v541 = vld [vmem:[%s4 + $0x30] sm:$0xff]
  %v542 = vld [vmem:[%s4 + $0x38] sm:$0xff]
  %vm543 = vcmask 523264
  %v545 = vsel %vm543, %v288, 0
  %v548 = vsel %vm543, %v293, 0
  %v551 = vsel %vm543, %v298, 0
  %v554 = vsel %vm543, %v303, 0
  %v557 = vsel %vm543, %v308, 0
  %v560 = vsel %vm543, %v313, 0
  %v563 = vsel %vm543, %v318, 0
  %v566 = vsel %vm543, %v323, 0
  %568 = vmatprep.subr.mxu0 0.0
  %569 = vmatpush1.msra.mxu0 %v535
  %570 = vmatprep.subr.mxu0 0.0
  %571 = vmatpush1.msra.mxu0 %v536
  %572 = vmatprep.subr.mxu0 0.0
  %573 = vmatpush1.msra.mxu0 %v537
  %574 = vmatprep.subr.mxu0 0.0
  %575 = vmatpush1.msra.mxu0 %v538
  %576 = vmatprep.subr.mxu0 0.0
  %577 = vmatpush1.msra.mxu0 %v539
  %578 = vmatprep.subr.mxu0 0.0
  %579 = vmatpush1.msra.mxu0 %v540
  %580 = vmatprep.subr.mxu0 0.0
  %581 = vmatpush1.msra.mxu0 %v541
  %582 = vmatprep.subr.mxu0 0.0
  %583 = vmatpush1.msra.mxu0 %v542
  %584 = vmatprep.subr.mxu0 0.0
  %585 = vmatpush1.msra.mxu0 0.0
  %586 = vmatprep.subr.mxu0 0.0
  %587 = vmatpush1.msra.mxu0 0.0
  %588 = vmatprep.subr.mxu0 0.0
  %589 = vmatpush1.msra.mxu0 0.0
  %590 = vmatprep.subr.mxu0 0.0
  %591 = vmatpush1.msra.mxu0 0.0
  %592 = vmatprep.subr.mxu0 0.0
  %593 = vmatpush1.msra.mxu0 0.0
  %594 = vmatprep.subr.mxu0 0.0
  %595 = vmatpush1.msra.mxu0 0.0
  %596 = vmatprep.subr.mxu0 0.0
  %597 = vmatpush1.msra.mxu0 0.0
  %598 = vmatprep.subr.mxu0 0.0
  %599 = vmatpush1.msra.mxu0 0.0
  %600 = vmatprep.subr.mxu0 0.0
  %601 = vmatpush1.msra.mxu0 0.0
  %602 = vmatprep.subr.mxu0 0.0
  %603 = vmatpush1.msra.mxu0 0.0
  %604 = vmatprep.subr.mxu0 0.0
  %605 = vmatpush1.msra.mxu0 0.0
  %606 = vmatprep.subr.mxu0 0.0
  %607 = vmatpush1.msra.mxu0 0.0
  %608 = vmatprep.subr.mxu0 0.0
  %609 = vmatpush1.msra.mxu0 0.0
  %610 = vmatprep.subr.mxu0 0.0
  %611 = vmatpush1.msra.mxu0 0.0
  %612 = vmatprep.subr.mxu0 0.0
  %613 = vmatpush1.msra.mxu0 0.0
  %614 = vmatprep.subr.mxu0 0.0
  %615 = vmatpush1.msra.mxu0 0.0
  %616 = vmatprep.subr.mxu0 0.0
  %617 = vmatpush1.msra.mxu0 0.0
  %618 = vmatprep.subr.mxu0 0.0
  %619 = vmatpush1.msra.mxu0 0.0
  %620 = vmatprep.subr.mxu0 0.0
  %621 = vmatpush1.msra.mxu0 0.0
  %622 = vmatprep.subr.mxu0 0.0
  %623 = vmatpush1.msra.mxu0 0.0
  %624 = vmatprep.subr.mxu0 0.0
  %625 = vmatpush1.msra.mxu0 0.0
  %626 = vmatprep.subr.mxu0 0.0
  %627 = vmatpush1.msra.mxu0 0.0
  %628 = vmatprep.subr.mxu0 0.0
  %629 = vmatpush1.msra.mxu0 0.0
  %630 = vmatprep.subr.mxu0 0.0
  %631 = vmatpush1.msra.mxu0 0.0
  %632 = vmatprep.mubr.f32.mxu0 0.0
  %633 = vmatmul.mubr.f32.gmra.mrb[0].mxu0 %v545
  %v634 = vpop.f32.mrb[0].mxu0
  %v635 = vadd.f32 0.0, %v634
  %v636 = vpop.f32.mrb[0].mxu0
  %637 = vmatprep.mubr.f32.mxu0 0.0
  %638 = vmatmul.mubr.f32.gmra.mrb[0].mxu0 %v548
  %v639 = vpop.f32.mrb[0].mxu0
  %v640 = vadd.f32 0.0, %v639
  %v641 = vpop.f32.mrb[0].mxu0
  %642 = vmatprep.mubr.f32.mxu0 0.0
  %643 = vmatmul.mubr.f32.gmra.mrb[0].mxu0 %v551
  %v644 = vpop.f32.mrb[0].mxu0
  %v645 = vadd.f32 0.0, %v644
  %v646 = vpop.f32.mrb[0].mxu0
  %647 = vmatprep.mubr.f32.mxu0 0.0
  %648 = vmatmul.mubr.f32.gmra.mrb[0].mxu0 %v554
  %v649 = vpop.f32.mrb[0].mxu0
  %v650 = vadd.f32 0.0, %v649
  %v651 = vpop.f32.mrb[0].mxu0
  %652 = vmatprep.mubr.f32.mxu0 0.0
  %653 = vmatmul.mubr.f32.gmra.mrb[0].mxu0 %v557
  %v654 = vpop.f32.mrb[0].mxu0
  %v655 = vadd.f32 0.0, %v654
  %v656 = vpop.f32.mrb[0].mxu0
  %657 = vmatprep.mubr.f32.mxu0 0.0
  %658 = vmatmul.mubr.f32.gmra.mrb[0].mxu0 %v560
  %v659 = vpop.f32.mrb[0].mxu0
  %v660 = vadd.f32 0.0, %v659
  %v661 = vpop.f32.mrb[0].mxu0
  %662 = vmatprep.mubr.f32.mxu0 0.0
  %663 = vmatmul.mubr.f32.gmra.mrb[0].mxu0 %v563
  %v664 = vpop.f32.mrb[0].mxu0
  %v665 = vadd.f32 0.0, %v664
  %v666 = vpop.f32.mrb[0].mxu0
  %667 = vmatprep.mubr.f32.mxu0 0.0
  %668 = vmatmul.mubr.f32.gmra.mrb[0].mxu0 %v566
  %v669 = vpop.f32.mrb[0].mxu0
  %v670 = vadd.f32 0.0, %v669
  %v671 = vpop.f32.mrb[0].mxu0
  %672 = vdwg.mxu0
  %v673 = vmax.f32 %v635, 0.0
  %v674 = vmax.f32 %v640, 0.0
  %v675 = vmax.f32 %v645, 0.0
  %v676 = vmax.f32 %v650, 0.0
  %v677 = vmax.f32 %v655, 0.0
  %v678 = vmax.f32 %v660, 0.0
  %v679 = vmax.f32 %v665, 0.0
  %v680 = vmax.f32 %v670, 0.0
  %v681 = vld [vmem:[%s5] sm:$0xff]
  %v682 = vld [vmem:[%s5 + $0x8] sm:$0xff]
  %v683 = vld [vmem:[%s5 + $0x10] sm:$0xff]
  %v684 = vld [vmem:[%s5 + $0x18] sm:$0xff]
  %vm685 = vcmask 261120
  %v687 = vsel %vm685, %v673, 0
  %v690 = vsel %vm685, %v674, 0
  %v693 = vsel %vm685, %v675, 0
  %v696 = vsel %vm685, %v676, 0
  %v699 = vsel %vm685, %v677, 0
  %v702 = vsel %vm685, %v678, 0
  %v705 = vsel %vm685, %v679, 0
  %v708 = vsel %vm685, %v680, 0
  %710 = vmatprep.subr.mxu0 0.0
  %711 = vmatpush1.msra.mxu0 %v681
  %712 = vmatprep.subr.mxu0 0.0
  %713 = vmatpush1.msra.mxu0 %v682
  %714 = vmatprep.subr.mxu0 0.0
  %715 = vmatpush1.msra.mxu0 %v683
  %716 = vmatprep.subr.mxu0 0.0
  %717 = vmatpush1.msra.mxu0 %v684
  %718 = vmatprep.subr.mxu0 0.0
  %719 = vmatpush1.msra.mxu0 0.0
  %720 = vmatprep.subr.mxu0 0.0
  %721 = vmatpush1.msra.mxu0 0.0
  %722 = vmatprep.subr.mxu0 0.0
  %723 = vmatpush1.msra.mxu0 0.0
  %724 = vmatprep.subr.mxu0 0.0
  %725 = vmatpush1.msra.mxu0 0.0
  %726 = vmatprep.subr.mxu0 0.0
  %727 = vmatpush1.msra.mxu0 0.0
  %728 = vmatprep.subr.mxu0 0.0
  %729 = vmatpush1.msra.mxu0 0.0
  %730 = vmatprep.subr.mxu0 0.0
  %731 = vmatpush1.msra.mxu0 0.0
  %732 = vmatprep.subr.mxu0 0.0
  %733 = vmatpush1.msra.mxu0 0.0
  %734 = vmatprep.subr.mxu0 0.0
  %735 = vmatpush1.msra.mxu0 0.0
  %736 = vmatprep.subr.mxu0 0.0
  %737 = vmatpush1.msra.mxu0 0.0
  %738 = vmatprep.subr.mxu0 0.0
  %739 = vmatpush1.msra.mxu0 0.0
  %740 = vmatprep.subr.mxu0 0.0
  %741 = vmatpush1.msra.mxu0 0.0
  %742 = vmatprep.subr.mxu0 0.0
  %743 = vmatpush1.msra.mxu0 0.0
  %744 = vmatprep.subr.mxu0 0.0
  %745 = vmatpush1.msra.mxu0 0.0
  %746 = vmatprep.subr.mxu0 0.0
  %747 = vmatpush1.msra.mxu0 0.0
  %748 = vmatprep.subr.mxu0 0.0
  %749 = vmatpush1.msra.mxu0 0.0
  %750 = vmatprep.subr.mxu0 0.0
  %751 = vmatpush1.msra.mxu0 0.0
  %752 = vmatprep.subr.mxu0 0.0
  %753 = vmatpush1.msra.mxu0 0.0
  %754 = vmatprep.subr.mxu0 0.0
  %755 = vmatpush1.msra.mxu0 0.0
  %756 = vmatprep.subr.mxu0 0.0
  %757 = vmatpush1.msra.mxu0 0.0
  %758 = vmatprep.subr.mxu0 0.0
  %759 = vmatpush1.msra.mxu0 0.0
  %760 = vmatprep.subr.mxu0 0.0
  %761 = vmatpush1.msra.mxu0 0.0
  %762 = vmatprep.subr.mxu0 0.0
  %763 = vmatpush1.msra.mxu0 0.0
  %764 = vmatprep.subr.mxu0 0.0
  %765 = vmatpush1.msra.mxu0 0.0
  %766 = vmatprep.subr.mxu0 0.0
  %767 = vmatpush1.msra.mxu0 0.0
  %768 = vmatprep.subr.mxu0 0.0
  %769 = vmatpush1.msra.mxu0 0.0
  %770 = vmatprep.subr.mxu0 0.0
  %771 = vmatpush1.msra.mxu0 0.0
  %772 = vmatprep.subr.mxu0 0.0
  %773 = vmatpush1.msra.mxu0 0.0
  %774 = vmatprep.mubr.f32.mxu0 0.0
  %775 = vmatmul.mubr.f32.gmra.mrb[0].mxu0 %v687
  %v776 = vpop.f32.mrb[0].mxu0
  %v777 = vadd.f32 0.0, %v776
  %v778 = vpop.f32.mrb[0].mxu0
  %779 = vmatprep.mubr.f32.mxu0 0.0
  %780 = vmatmul.mubr.f32.gmra.mrb[0].mxu0 %v690
  %v781 = vpop.f32.mrb[0].mxu0
  %v782 = vadd.f32 0.0, %v781
  %v783 = vpop.f32.mrb[0].mxu0
  %784 = vmatprep.mubr.f32.mxu0 0.0
  %785 = vmatmul.mubr.f32.gmra.mrb[0].mxu0 %v693
  %v786 = vpop.f32.mrb[0].mxu0
  %v787 = vadd.f32 0.0, %v786
  %v788 = vpop.f32.mrb[0].mxu0
  %789 = vmatprep.mubr.f32.mxu0 0.0
  %790 = vmatmul.mubr.f32.gmra.mrb[0].mxu0 %v696
  %v791 = vpop.f32.mrb[0].mxu0
  %v792 = vadd.f32 0.0, %v791
  %v793 = vpop.f32.mrb[0].mxu0
  %794 = vmatprep.mubr.f32.mxu0 0.0
  %795 = vmatmul.mubr.f32.gmra.mrb[0].mxu0 %v699
  %v796 = vpop.f32.mrb[0].mxu0
  %v797 = vadd.f32 0.0, %v796
  %v798 = vpop.f32.mrb[0].mxu0
  %799 = vmatprep.mubr.f32.mxu0 0.0
  %800 = vmatmul.mubr.f32.gmra.mrb[0].mxu0 %v702
  %v801 = vpop.f32.mrb[0].mxu0
  %v802 = vadd.f32 0.0, %v801
  %v803 = vpop.f32.mrb[0].mxu0
  %804 = vmatprep.mubr.f32.mxu0 0.0
  %805 = vmatmul.mubr.f32.gmra.mrb[0].mxu0 %v705
  %v806 = vpop.f32.mrb[0].mxu0
  %v807 = vadd.f32 0.0, %v806
  %v808 = vpop.f32.mrb[0].mxu0
  %809 = vmatprep.mubr.f32.mxu0 0.0
  %810 = vmatmul.mubr.f32.gmra.mrb[0].mxu0 %v708
  %v811 = vpop.f32.mrb[0].mxu0
  %v812 = vadd.f32 0.0, %v811
  %v813 = vpop.f32.mrb[0].mxu0
  %814 = vdwg.mxu0
  %v815 = vmax.f32 %v777, 0.0
  %v816 = vmax.f32 %v782, 0.0
  %v817 = vmax.f32 %v787, 0.0
  %v818 = vmax.f32 %v792, 0.0
  %v819 = vmax.f32 %v797, 0.0
  %v820 = vmax.f32 %v802, 0.0
  %v821 = vmax.f32 %v807, 0.0
  %v822 = vmax.f32 %v812, 0.0
  %v823 = vld [vmem:[%s6] sm:$0x1]
  %v825 = vlaneseq
  %v826 = vshrl.u32 %v825, 7
  %v827 = vsub.s32 0, %v826
  %v828 = vrot.slane %v823, %v827
  %v830 = vmul.f32 %v815, %v828
  %v831 = vmul.f32 %v816, %v828
  %v832 = vmul.f32 %v817, %v828
  %v833 = vmul.f32 %v818, %v828
  %v834 = vmul.f32 %v819, %v828
  %v835 = vmul.f32 %v820, %v828
  %v836 = vmul.f32 %v821, %v828
  %v837 = vmul.f32 %v822, %v828
  %v838 = vsel %vm685, %v830, 0.0
  %839 = vadd.xlane.f32.xlu0 %v838
  %v840 = vpop.xlane.xlu0 %839
  %v841 = vsel %vm685, %v831, 0.0
  %842 = vadd.xlane.f32.xlu0 %v841
  %v843 = vpop.xlane.xlu0 %842
  %v844 = vsel %vm685, %v832, 0.0
  %845 = vadd.xlane.f32.xlu0 %v844
  %v846 = vpop.xlane.xlu0 %845
  %v847 = vsel %vm685, %v833, 0.0
  %848 = vadd.xlane.f32.xlu0 %v847
  %v849 = vpop.xlane.xlu0 %848
  %v850 = vsel %vm685, %v834, 0.0
  %851 = vadd.xlane.f32.xlu0 %v850
  %v852 = vpop.xlane.xlu0 %851
  %v853 = vsel %vm685, %v835, 0.0
  %854 = vadd.xlane.f32.xlu0 %v853
  %v855 = vpop.xlane.xlu0 %854
  %v856 = vsel %vm685, %v836, 0.0
  %857 = vadd.xlane.f32.xlu0 %v856
  %v858 = vpop.xlane.xlu0 %857
  %v859 = vsel %vm685, %v837, 0.0
  %860 = vadd.xlane.f32.xlu0 %v859
  %v861 = vpop.xlane.xlu0 %860
  %v862 = vsub.f32 0.0, %v840
  %v863 = vsub.f32 0.0, %v843
  %v864 = vsub.f32 0.0, %v846
  %v865 = vsub.f32 0.0, %v849
  %v866 = vsub.f32 0.0, %v852
  %v867 = vsub.f32 0.0, %v855
  %v868 = vsub.f32 0.0, %v858
  %v869 = vsub.f32 0.0, %v861
  %v870 = vmul.f32 %v862, 1.442695
  %v871 = vpow.pop %v870
  %v872 = vmul.f32 %v863, 1.442695
  %v873 = vpow.pop %v872
  %v874 = vmul.f32 %v864, 1.442695
  %v875 = vpow.pop %v874
  %v876 = vmul.f32 %v865, 1.442695
  %v877 = vpow.pop %v876
  %v878 = vmul.f32 %v866, 1.442695
  %v879 = vpow.pop %v878
  %v880 = vmul.f32 %v867, 1.442695
  %v881 = vpow.pop %v880
  %v882 = vmul.f32 %v868, 1.442695
  %v883 = vpow.pop %v882
  %v884 = vmul.f32 %v869, 1.442695
  %v885 = vpow.pop %v884
  %v886 = vadd.f32 %v871, 1.0
  %v887 = vadd.f32 %v873, 1.0
  %v888 = vadd.f32 %v875, 1.0
  %v889 = vadd.f32 %v877, 1.0
  %v890 = vadd.f32 %v879, 1.0
  %v891 = vadd.f32 %v881, 1.0
  %v892 = vadd.f32 %v883, 1.0
  %v893 = vadd.f32 %v885, 1.0
  %v894 = vrcp.pop %v886
  %v895 = vrcp.pop %v887
  %v896 = vrcp.pop %v888
  %v897 = vrcp.pop %v889
  %v898 = vrcp.pop %v890
  %v899 = vrcp.pop %v891
  %v900 = vrcp.pop %v892
  %v901 = vrcp.pop %v893
  %v902 = vmul.f32 %v894, 1.442695
  %v903 = vpow.pop %v902
  %v904 = vmul.f32 %v895, 1.442695
  %v905 = vpow.pop %v904
  %v906 = vmul.f32 %v896, 1.442695
  %v907 = vpow.pop %v906
  %v908 = vmul.f32 %v897, 1.442695
  %v909 = vpow.pop %v908
  %v910 = vmul.f32 %v898, 1.442695
  %v911 = vpow.pop %v910
  %v912 = vmul.f32 %v899, 1.442695
  %v913 = vpow.pop %v912
  %v914 = vmul.f32 %v900, 1.442695
  %v915 = vpow.pop %v914
  %v916 = vmul.f32 %v901, 1.442695
  %v917 = vpow.pop %v916
  %v918 = vlaneseq
  %v919 = vshrl.u32 %v918, 7
  %v920 = vmul.u32 %v919, 8
  %v921 = vsub.s32 %v35, %v920
  %vm922 = vcmp.ge.s32.totalorder %v921, 0
  %vm923 = vcmp.lt.s32.totalorder %v921, 8
  %vm924 = vmand %vm922, %vm923
  %v925 = vsel %vm924, 1, 0
  %v926 = vcvt.s32.f32 %v925
  %v927 = vmul.f32 %v903, %v417
  %v928 = vmul.f32 %v905, %v422
  %v929 = vmul.f32 %v907, %v427
  %v930 = vmul.f32 %v909, %v432
  %v931 = vmul.f32 %v911, %v437
  %v932 = vmul.f32 %v913, %v442
  %v933 = vmul.f32 %v915, %v447
  %v934 = vmul.f32 %v917, %v452
  %v936 = vsel %vm543, %v926, 0
  %938 = vmatprep.subr.mxu0 0.0
  %939 = vmatpush1.msra.mxu0 %v927
  %940 = vmatprep.subr.mxu0 0.0
  %941 = vmatpush1.msra.mxu0 %v928
  %942 = vmatprep.subr.mxu0 0.0
  %943 = vmatpush1.msra.mxu0 %v929
  %944 = vmatprep.subr.mxu0 0.0
  %945 = vmatpush1.msra.mxu0 %v930
  %946 = vmatprep.subr.mxu0 0.0
  %947 = vmatpush1.msra.mxu0 %v931
  %948 = vmatprep.subr.mxu0 0.0
  %949 = vmatpush1.msra.mxu0 %v932
  %950 = vmatprep.subr.mxu0 0.0
  %951 = vmatpush1.msra.mxu0 %v933
  %952 = vmatprep.subr.mxu0 0.0
  %953 = vmatpush1.msra.mxu0 %v934
  %954 = vmatprep.subr.mxu0 0.0
  %955 = vmatpush1.msra.mxu0 0.0
  %956 = vmatprep.subr.mxu0 0.0
  %957 = vmatpush1.msra.mxu0 0.0
  %958 = vmatprep.subr.mxu0 0.0
  %959 = vmatpush1.msra.mxu0 0.0
  %960 = vmatprep.subr.mxu0 0.0
  %961 = vmatpush1.msra.mxu0 0.0
  %962 = vmatprep.subr.mxu0 0.0
  %963 = vmatpush1.msra.mxu0 0.0
  %964 = vmatprep.subr.mxu0 0.0
  %965 = vmatpush1.msra.mxu0 0.0
  %966 = vmatprep.subr.mxu0 0.0
  %967 = vmatpush1.msra.mxu0 0.0
  %968 = vmatprep.subr.mxu0 0.0
  %969 = vmatpush1.msra.mxu0 0.0
  %970 = vmatprep.subr.mxu0 0.0
  %971 = vmatpush1.msra.mxu0 0.0
  %972 = vmatprep.subr.mxu0 0.0
  %973 = vmatpush1.msra.mxu0 0.0
  %974 = vmatprep.subr.mxu0 0.0
  %975 = vmatpush1.msra.mxu0 0.0
  %976 = vmatprep.subr.mxu0 0.0
  %977 = vmatpush1.msra.mxu0 0.0
  %978 = vmatprep.subr.mxu0 0.0
  %979 = vmatpush1.msra.mxu0 0.0
  %980 = vmatprep.subr.mxu0 0.0
  %981 = vmatpush1.msra.mxu0 0.0
  %982 = vmatprep.subr.mxu0 0.0
  %983 = vmatpush1.msra.mxu0 0.0
  %984 = vmatprep.subr.mxu0 0.0
  %985 = vmatpush1.msra.mxu0 0.0
  %986 = vmatprep.subr.mxu0 0.0
  %987 = vmatpush1.msra.mxu0 0.0
  %988 = vmatprep.subr.mxu0 0.0
  %989 = vmatpush1.msra.mxu0 0.0
  %990 = vmatprep.subr.mxu0 0.0
  %991 = vmatpush1.msra.mxu0 0.0
  %992 = vmatprep.subr.mxu0 0.0
  %993 = vmatpush1.msra.mxu0 0.0
  %994 = vmatprep.subr.mxu0 0.0
  %995 = vmatpush1.msra.mxu0 0.0
  %996 = vmatprep.subr.mxu0 0.0
  %997 = vmatpush1.msra.mxu0 0.0
  %998 = vmatprep.subr.mxu0 0.0
  %999 = vmatpush1.msra.mxu0 0.0
  %1000 = vmatprep.subr.mxu0 0.0
  %1001 = vmatpush1.msra.mxu0 0.0
  %1002 = vmatprep.mubr.f32.mxu0 0.0
  %1003 = vmatmul.mubr.f32.gmra.mrb[0].mxu0 %v936
  %v1004 = vpop.f32.mrb[0].mxu0
  %v1005 = vadd.f32 0.0, %v1004
  %v1006 = vpop.f32.mrb[0].mxu0
  %1007 = vdwg.mxu0
  %1008 = vmatprep.subr.mxu0 0.0
  %1009 = vmatpush1.msra.mxu0 %v903
  %1010 = vmatprep.subr.mxu0 0.0
  %1011 = vmatpush1.msra.mxu0 %v905
  %1012 = vmatprep.subr.mxu0 0.0
  %1013 = vmatpush1.msra.mxu0 %v907
  %1014 = vmatprep.subr.mxu0 0.0
  %1015 = vmatpush1.msra.mxu0 %v909
  %1016 = vmatprep.subr.mxu0 0.0
  %1017 = vmatpush1.msra.mxu0 %v911
  %1018 = vmatprep.subr.mxu0 0.0
  %1019 = vmatpush1.msra.mxu0 %v913
  %1020 = vmatprep.subr.mxu0 0.0
  %1021 = vmatpush1.msra.mxu0 %v915
  %1022 = vmatprep.subr.mxu0 0.0
  %1023 = vmatpush1.msra.mxu0 %v917
  %1024 = vmatprep.subr.mxu0 0.0
  %1025 = vmatpush1.msra.mxu0 0.0
  %1026 = vmatprep.subr.mxu0 0.0
  %1027 = vmatpush1.msra.mxu0 0.0
  %1028 = vmatprep.subr.mxu0 0.0
  %1029 = vmatpush1.msra.mxu0 0.0
  %1030 = vmatprep.subr.mxu0 0.0
  %1031 = vmatpush1.msra.mxu0 0.0
  %1032 = vmatprep.subr.mxu0 0.0
  %1033 = vmatpush1.msra.mxu0 0.0
  %1034 = vmatprep.subr.mxu0 0.0
  %1035 = vmatpush1.msra.mxu0 0.0
  %1036 = vmatprep.subr.mxu0 0.0
  %1037 = vmatpush1.msra.mxu0 0.0
  %1038 = vmatprep.subr.mxu0 0.0
  %1039 = vmatpush1.msra.mxu0 0.0
  %1040 = vmatprep.subr.mxu0 0.0
  %1041 = vmatpush1.msra.mxu0 0.0
  %1042 = vmatprep.subr.mxu0 0.0
  %1043 = vmatpush1.msra.mxu0 0.0
  %1044 = vmatprep.subr.mxu0 0.0
  %1045 = vmatpush1.msra.mxu0 0.0
  %1046 = vmatprep.subr.mxu0 0.0
  %1047 = vmatpush1.msra.mxu0 0.0
  %1048 = vmatprep.subr.mxu0 0.0
  %1049 = vmatpush1.msra.mxu0 0.0
  %1050 = vmatprep.subr.mxu0 0.0
  %1051 = vmatpush1.msra.mxu0 0.0
  %1052 = vmatprep.subr.mxu0 0.0
  %1053 = vmatpush1.msra.mxu0 0.0
  %1054 = vmatprep.subr.mxu0 0.0
  %1055 = vmatpush1.msra.mxu0 0.0
  %1056 = vmatprep.subr.mxu0 0.0
  %1057 = vmatpush1.msra.mxu0 0.0
  %1058 = vmatprep.subr.mxu0 0.0
  %1059 = vmatpush1.msra.mxu0 0.0
  %1060 = vmatprep.subr.mxu0 0.0
  %1061 = vmatpush1.msra.mxu0 0.0
  %1062 = vmatprep.subr.mxu0 0.0
  %1063 = vmatpush1.msra.mxu0 0.0
  %1064 = vmatprep.subr.mxu0 0.0
  %1065 = vmatpush1.msra.mxu0 0.0
  %1066 = vmatprep.subr.mxu0 0.0
  %1067 = vmatpush1.msra.mxu0 0.0
  %1068 = vmatprep.subr.mxu0 0.0
  %1069 = vmatpush1.msra.mxu0 0.0
  %1070 = vmatprep.subr.mxu0 0.0
  %1071 = vmatpush1.msra.mxu0 0.0
  %1072 = vmatprep.mubr.f32.mxu0 0.0
  %1073 = vmatmul.mubr.f32.gmra.mrb[0].mxu0 %v936
  %v1074 = vpop.f32.mrb[0].mxu0
  %v1075 = vadd.f32 0.0, %v1074
  %v1076 = vpop.f32.mrb[0].mxu0
  %1077 = vdwg.mxu0
  %v1078 = vrcp.pop %v1075
  %v1079 = vmul.f32 %v1005, %v1078
  %1080 = vmatprep.subr.mxu0 0.0
  %1081 = vmatpush1.msra.mxu0 %v288
  %1082 = vmatprep.subr.mxu0 0.0
  %1083 = vmatpush1.msra.mxu0 %v293
  %1084 = vmatprep.subr.mxu0 0.0
  %1085 = vmatpush1.msra.mxu0 %v298
  %1086 = vmatprep.subr.mxu0 0.0
  %1087 = vmatpush1.msra.mxu0 %v303
  %1088 = vmatprep.subr.mxu0 0.0
  %1089 = vmatpush1.msra.mxu0 %v308
  %1090 = vmatprep.subr.mxu0 0.0
  %1091 = vmatpush1.msra.mxu0 %v313
  %1092 = vmatprep.subr.mxu0 0.0
  %1093 = vmatpush1.msra.mxu0 %v318
  %1094 = vmatprep.subr.mxu0 0.0
  %1095 = vmatpush1.msra.mxu0 %v323
  %1096 = vmatprep.subr.mxu0 0.0
  %1097 = vmatpush1.msra.mxu0 0.0
  %1098 = vmatprep.subr.mxu0 0.0
  %1099 = vmatpush1.msra.mxu0 0.0
  %1100 = vmatprep.subr.mxu0 0.0
  %1101 = vmatpush1.msra.mxu0 0.0
  %1102 = vmatprep.subr.mxu0 0.0
  %1103 = vmatpush1.msra.mxu0 0.0
  %1104 = vmatprep.subr.mxu0 0.0
  %1105 = vmatpush1.msra.mxu0 0.0
  %1106 = vmatprep.subr.mxu0 0.0
  %1107 = vmatpush1.msra.mxu0 0.0
  %1108 = vmatprep.subr.mxu0 0.0
  %1109 = vmatpush1.msra.mxu0 0.0
  %1110 = vmatprep.subr.mxu0 0.0
  %1111 = vmatpush1.msra.mxu0 0.0
  %1112 = vmatprep.subr.mxu0 0.0
  %1113 = vmatpush1.msra.mxu0 0.0
  %1114 = vmatprep.subr.mxu0 0.0
  %1115 = vmatpush1.msra.mxu0 0.0
  %1116 = vmatprep.subr.mxu0 0.0
  %1117 = vmatpush1.msra.mxu0 0.0
  %1118 = vmatprep.subr.mxu0 0.0
  %1119 = vmatpush1.msra.mxu0 0.0
  %1120 = vmatprep.subr.mxu0 0.0
  %1121 = vmatpush1.msra.mxu0 0.0
  %1122 = vmatprep.subr.mxu0 0.0
  %1123 = vmatpush1.msra.mxu0 0.0
  %1124 = vmatprep.subr.mxu0 0.0
  %1125 = vmatpush1.msra.mxu0 0.0
  %1126 = vmatprep.subr.mxu0 0.0
  %1127 = vmatpush1.msra.mxu0 0.0
  %1128 = vmatprep.subr.mxu0 0.0
  %1129 = vmatpush1.msra.mxu0 0.0
  %1130 = vmatprep.subr.mxu0 0.0
  %1131 = vmatpush1.msra.mxu0 0.0
  %1132 = vmatprep.subr.mxu0 0.0
  %1133 = vmatpush1.msra.mxu0 0.0
  %1134 = vmatprep.subr.mxu0 0.0
  %1135 = vmatpush1.msra.mxu0 0.0
  %1136 = vmatprep.subr.mxu0 0.0
  %1137 = vmatpush1.msra.mxu0 0.0
  %1138 = vmatprep.subr.mxu0 0.0
  %1139 = vmatpush1.msra.mxu0 0.0
  %1140 = vmatprep.subr.mxu0 0.0
  %1141 = vmatpush1.msra.mxu0 0.0
  %1142 = vmatprep.subr.mxu0 0.0
  %1143 = vmatpush1.msra.mxu0 0.0
  %1144 = vmatprep.mubr.f32.mxu0 0.0
  %1145 = vmatmul.mubr.f32.gmra.mrb[0].mxu0 %v936
  %v1146 = vpop.f32.mrb[0].mxu0
  %v1147 = vadd.f32 0.0, %v1146
  %v1148 = vpop.f32.mrb[0].mxu0
  %1149 = vdwg.mxu0
  %v1150 = vmul.f32 %v1147, 0.125
  %v1152 = vrot.slane %v1079, 4
  %v1154 = vmul.f32 %v1079, %v1152
  %vm1155 = vcmp.eq.s32.totalorder %v35, %v919
  %v1156 = vsel %vm1155, 1, 0
  %v1157 = vcvt.s32.f32 %v1156
  %v1158 = vadd.f32 %v1157, 0.0
  %v1159 = vadd.s32 %v919, 2
  %vm1160 = vcmp.eq.s32.totalorder %v35, %v1159
  %v1161 = vsel %vm1160, 1, 0
  %v1162 = vcvt.s32.f32 %v1161
  %v1163 = vadd.f32 %v1158, %v1162
  %vm1164 = vcmask 31744
  %v1166 = vsel %vm1164, %v1163, 0
  %vm1168 = vcmask 1043456
  %v1170 = vsel %vm1168, %v1154, 0
  %1172 = vmatprep.subr.mxu0 0.0
  %1173 = vmatpush1.msra.mxu0 %v1170
  %1174 = vmatprep.subr.mxu0 0.0
  %1175 = vmatpush1.msra.mxu0 0.0
  %1176 = vmatprep.subr.mxu0 0.0
  %1177 = vmatpush1.msra.mxu0 0.0
  %1178 = vmatprep.subr.mxu0 0.0
  %1179 = vmatpush1.msra.mxu0 0.0
  %1180 = vmatprep.subr.mxu0 0.0
  %1181 = vmatpush1.msra.mxu0 0.0
  %1182 = vmatprep.subr.mxu0 0.0
  %1183 = vmatpush1.msra.mxu0 0.0
  %1184 = vmatprep.subr.mxu0 0.0
  %1185 = vmatpush1.msra.mxu0 0.0
  %1186 = vmatprep.subr.mxu0 0.0
  %1187 = vmatpush1.msra.mxu0 0.0
  %1188 = vmatprep.subr.mxu0 0.0
  %1189 = vmatpush1.msra.mxu0 0.0
  %1190 = vmatprep.subr.mxu0 0.0
  %1191 = vmatpush1.msra.mxu0 0.0
  %1192 = vmatprep.subr.mxu0 0.0
  %1193 = vmatpush1.msra.mxu0 0.0
  %1194 = vmatprep.subr.mxu0 0.0
  %1195 = vmatpush1.msra.mxu0 0.0
  %1196 = vmatprep.subr.mxu0 0.0
  %1197 = vmatpush1.msra.mxu0 0.0
  %1198 = vmatprep.subr.mxu0 0.0
  %1199 = vmatpush1.msra.mxu0 0.0
  %1200 = vmatprep.subr.mxu0 0.0
  %1201 = vmatpush1.msra.mxu0 0.0
  %1202 = vmatprep.subr.mxu0 0.0
  %1203 = vmatpush1.msra.mxu0 0.0
  %1204 = vmatprep.subr.mxu0 0.0
  %1205 = vmatpush1.msra.mxu0 0.0
  %1206 = vmatprep.subr.mxu0 0.0
  %1207 = vmatpush1.msra.mxu0 0.0
  %1208 = vmatprep.subr.mxu0 0.0
  %1209 = vmatpush1.msra.mxu0 0.0
  %1210 = vmatprep.subr.mxu0 0.0
  %1211 = vmatpush1.msra.mxu0 0.0
  %1212 = vmatprep.subr.mxu0 0.0
  %1213 = vmatpush1.msra.mxu0 0.0
  %1214 = vmatprep.subr.mxu0 0.0
  %1215 = vmatpush1.msra.mxu0 0.0
  %1216 = vmatprep.subr.mxu0 0.0
  %1217 = vmatpush1.msra.mxu0 0.0
  %1218 = vmatprep.subr.mxu0 0.0
  %1219 = vmatpush1.msra.mxu0 0.0
  %1220 = vmatprep.subr.mxu0 0.0
  %1221 = vmatpush1.msra.mxu0 0.0
  %1222 = vmatprep.subr.mxu0 0.0
  %1223 = vmatpush1.msra.mxu0 0.0
  %1224 = vmatprep.subr.mxu0 0.0
  %1225 = vmatpush1.msra.mxu0 0.0
  %1226 = vmatprep.subr.mxu0 0.0
  %1227 = vmatpush1.msra.mxu0 0.0
  %1228 = vmatprep.subr.mxu0 0.0
  %1229 = vmatpush1.msra.mxu0 0.0
  %1230 = vmatprep.subr.mxu0 0.0
  %1231 = vmatpush1.msra.mxu0 0.0
  %1232 = vmatprep.subr.mxu0 0.0
  %1233 = vmatpush1.msra.mxu0 0.0
  %1234 = vmatprep.subr.mxu0 0.0
  %1235 = vmatpush1.msra.mxu0 0.0
  %1236 = vmatprep.mubr.f32.mxu0 0.0
  %1237 = vmatmul.mubr.f32.gmra.mrb[0].mxu0 %v1166
  %v1238 = vpop.f32.mrb[0].mxu0
  %v1239 = vadd.f32 0.0, %v1238
  %v1240 = vpop.f32.mrb[0].mxu0
  %1241 = vdwg.mxu0
  %v1242 = vmul.f32 %v1150, %v532
  %v1243 = vadd.f32 %v1242, %v1239
  %v1244 = vsel %vm685, %v1243, 0.0
  %1245 = vadd.xlane.f32.xlu0 %v1244
  %v1246 = vpop.xlane.xlu0 %1245
  %v1247 = vsub.f32 0.0, %v1246
  %v1248 = vmul.f32 %v1247, 1.442695
  %v1249 = vpow.pop %v1248
  %v1250 = vadd.f32 %v1249, 1.0
  %v1251 = vrcp.pop %v1250
  %v1252 = vmax.f32 %v1247, 0.0
  %v1253 = vand.u32 2147483647, %v1247
  %v1254 = vsub.f32 0.0, %v1253
  %v1255 = vmul.f32 %v1254, 1.442695
  %v1256 = vpow.pop %v1255
  %v1257 = vadd.f32 %v1256, 1.0
  %v1258 = vlog2.pop %v1257
  %v1259 = vmul.f32 %v1258, 0.6931472
  %v1260 = vadd.f32 %v1252, %v1259
  %v1261 = vsub.f32 0.0, %v1260
  %v1262 = vmax.f32 %v1261, -100.0
  %v1263 = vmax.f32 %v1246, 0.0
  %v1264 = vand.u32 2147483647, %v1246
  %v1265 = vsub.f32 0.0, %v1264
  %v1266 = vmul.f32 %v1265, 1.442695
  %v1267 = vpow.pop %v1266
  %v1268 = vadd.f32 %v1267, 1.0
  %v1269 = vlog2.pop %v1268
  %v1270 = vmul.f32 %v1269, 0.6931472
  %v1271 = vadd.f32 %v1263, %v1270
  %v1272 = vsub.f32 0.0, %v1271
  %v1273 = vmax.f32 %v1272, -100.0
  %v1274 = vld [vmem:[%s2] sm:$0xff]
  %vm1275 = vcmp.lt.s32.totalorder %v919, 2
  %v1276 = vsel %vm1275, 1, 0
  %v1277 = vcvt.s32.f32 %v1276
  %v1278 = vmul.f32 %v1274, %v1262
  %v1279 = vsub.f32 1.0, %v1274
  %v1280 = vmul.f32 %v1279, %v1273
  %v1281 = vadd.f32 %v1278, %v1280
  %v1282 = vsub.f32 0.0, %v1281
  %v1283 = vmul.f32 %v1282, %v1277
  %vm1284 = vcmask 7168
  %v1285 = vsel %vm1284, %v1283, 0.0
  %v1286 = vrot.slane %v1285, 4
  %v1287 = vadd.f32 %v1285, %v1286
  %v1288 = vrot.slane %v1287, 2
  %v1289 = vadd.f32 %v1287, %v1288
  %v1290 = vrot.slane %v1289, 1
  %v1291 = vadd.f32 %v1289, %v1290
  %v1292 = vmul.f32 %v1291, 0.5
  %1294 = vset.pattern.permute.xlu0 0
  %1295 = vperm.xlu0 %1294, %v1292
  %v1296 = vpop.permute.xlu0 %1295
  %v1298 = vsel %vm1275, %v1251, %v1296
  %1299 = vst [vmem:[%s7] sm:$0xff] %v1298
  // Predicated region
  $region30: #{ckan_forward.1} parent=0 // pred_check
    _
  $region31: #{ckan_forward.1} parent=0 // pred_check_branch
    %1301 = sbr.rel (0) target = $region33
  $region32: #{ckan_forward.1} parent=0 // pred_region
    _
  $region33: #{ckan_forward.1} parent=0 // pred_fallthru
    _
  // Predicated region
  $region34: #{ckan_forward.1} parent=0 // pred_check
    _
  $region35: #{ckan_forward.1} parent=0 // pred_check_branch
    %1303 = sbr.rel (0) target = $region37
  $region36: #{ckan_forward.1} parent=0 // pred_region
    _
  $region37: #{ckan_forward.1} parent=0 // pred_fallthru
    _

</llo_original>
